<compile_context>
chip_gen: v5e
topology: v5e:2x2
jax: 0.10.0
libtpu: 0.0.40
codegen_flags: <defaults>
</compile_context>

<pallas_src>
import jax
import jax.numpy as jnp
from jax.experimental import pallas as pl
from jax.experimental.pallas import tpu as pltpu


def _round_up(x, m):
    return ((x + m - 1) // m) * m


# -----------------------------------------------------------------------------
# Fused per-time-block kernel.
#   e_ref:      (TT, B, E)   gathered embeddings for this time block
#   h0_ref:     (B, H)       initial hidden state
#   wih_ref:    (E, H)       W_ih^T
#   whh_ref:    (H, H)       W_hh^T
#   wfc_ref:    (H, V)       W_fc^T
#   brnn_ref:   (1, H)       folded bias  b_ih + b_hh
#   bfc_ref:    (1, V)       FC bias
#   logits_ref: (TT, B, V)   output logits for this block (time-major)
#   hlast_ref:  (B, H)       hidden state at global step T-1
#   h_carry:    VMEM (B, H)  recurrent carry across grid iterations
#   a_scratch:  VMEM (TT, B, H)
#   hs_scratch: VMEM (TT, B, H)
# -----------------------------------------------------------------------------
def _make_fused_rnn_kernel(tt, t_total, b_pad, e_pad, h_pad, v_pad):
    n_last = (t_total - 1) % tt  # local index of global step T-1 within the last block

    def kernel(e_ref, h0_ref, wih_ref, whh_ref, wfc_ref, brnn_ref, bfc_ref,
               logits_ref, hlast_ref, h_carry, a_scratch, hs_scratch):
        @pl.when(pl.program_id(0) == 0)
        def _():
            h_carry[...] = h0_ref[...].astype(jnp.float32)

        # (a) Hoisted non-recurrent input projection: one big matmul per block.
        e_flat = e_ref[...].reshape(tt * b_pad, e_pad)
        a_scratch[...] = (
            jnp.dot(e_flat, wih_ref[...], preferred_element_type=jnp.float32)
            + brnn_ref[...]
        ).reshape(tt, b_pad, h_pad)

        # (b) Sequential recurrence — the only serial part.
        def step(t, h):
            h_new = jnp.tanh(
                jnp.dot(h, whh_ref[...], preferred_element_type=jnp.float32)
                + a_scratch[t]
            )
            hs_scratch[t] = h_new
            return h_new

        h_carry[...] = jax.lax.fori_loop(0, tt, step, h_carry[...], unroll=True)

        # (c) FC head for the whole block: one big matmul per block.
        hs_flat = hs_scratch[...].reshape(tt * b_pad, h_pad)
        logits_ref[...] = (
            jnp.dot(hs_flat, wfc_ref[...], preferred_element_type=jnp.float32)
            + bfc_ref[...]
        ).reshape(tt, b_pad, v_pad).astype(logits_ref.dtype)

        # Final hidden state = hidden state at global step T-1 (always in the
        # last grid iteration, since T_pad - TT < T <= T_pad).
        @pl.when(pl.program_id(0) == pl.num_programs(0) - 1)
        def _():
            hlast_ref[...] = hs_scratch[n_last]

    return kernel


# -----------------------------------------------------------------------------
# Wrapper: matches PyTorch CharRNN.forward (batch-first logits, h of shape
# (num_layers=1, B, H)).  Weights are stored transposed relative to PyTorch so
# they can be right-multiplied directly.
# -----------------------------------------------------------------------------
@jax.jit
def char_rnn_forward(x, h, params):
    """x: int32 token ids (B, T). h: (1, B, H).  Returns (logits (B,T,V), h (1,B,H))."""
    embed_w, wih, whh, bih, bhh, wfc, bfc = params
    B, T = x.shape
    V, E = embed_w.shape
    H = whh.shape[0]

    # Hardware-aligned padded sizes.
    B_pad = _round_up(B, 8)
    E_pad = _round_up(E, 128)
    H_pad = _round_up(H, 128)
    V_pad = _round_up(V, 128)
    TT = T if T <= 32 else 32        # time steps per sequential grid iteration
    T_pad = _round_up(T, TT)
    n_blk = T_pad // TT

    f32 = jnp.float32
    embed_w_p = jnp.pad(embed_w.astype(f32), ((0, 0), (0, E_pad - E)))
    wih_p = jnp.pad(wih.astype(f32), ((0, E_pad - E), (0, H_pad - H)))
    whh_p = jnp.pad(whh.astype(f32), ((0, H_pad - H), (0, H_pad - H)))
    wfc_p = jnp.pad(wfc.astype(f32), ((0, H_pad - H), (0, V_pad - V)))
    b_rnn = jnp.pad((bih + bhh).astype(f32), ((0, 0), (0, H_pad - H)))  # folded RNN bias
    bfc_p = jnp.pad(bfc.astype(f32), ((0, 0), (0, V_pad - V)))

    # Embedding gather, built directly time-major, zero-padded to tiles.
    e_tm = jnp.take(embed_w_p, x.T, axis=0)                       # (T, B, E_pad)
    e_tm = jnp.pad(e_tm, ((0, T_pad - T), (0, B_pad - B), (0, 0)))

    h0 = jnp.pad(h[0].astype(f32), ((0, B_pad - B), (0, H_pad - H)))

    kernel = _make_fused_rnn_kernel(TT, T, B_pad, E_pad, H_pad, V_pad)
    logits_tm, h_last = pl.pallas_call(
        kernel,
        out_shape=(
            jax.ShapeDtypeStruct((T_pad, B_pad, V_pad), f32),
            jax.ShapeDtypeStruct((B_pad, H_pad), f32),
        ),
        grid_spec=pltpu.PrefetchScalarGridSpec(
            num_scalar_prefetch=0,
            grid=(n_blk,),
            in_specs=[
                pl.BlockSpec((TT, B_pad, E_pad), lambda tb: (tb, 0, 0)),  # e
                pl.BlockSpec((B_pad, H_pad), lambda tb: (0, 0)),          # h0
                pl.BlockSpec((E_pad, H_pad), lambda tb: (0, 0)),          # W_ih^T
                pl.BlockSpec((H_pad, H_pad), lambda tb: (0, 0)),          # W_hh^T
                pl.BlockSpec((H_pad, V_pad), lambda tb: (0, 0)),          # W_fc^T
                pl.BlockSpec((1, H_pad), lambda tb: (0, 0)),              # b_ih+b_hh
                pl.BlockSpec((1, V_pad), lambda tb: (0, 0)),              # b_fc
            ],
            out_specs=[
                pl.BlockSpec((TT, B_pad, V_pad), lambda tb: (tb, 0, 0)),  # logits (time-major)
                pl.BlockSpec((B_pad, H_pad), lambda tb: (0, 0)),          # h_{T-1}
            ],
            scratch_shapes=[
                pltpu.VMEM((B_pad, H_pad), f32),        # recurrent carry
                pltpu.VMEM((TT, B_pad, H_pad), f32),    # A block
                pltpu.VMEM((TT, B_pad, H_pad), f32),    # hidden-states block
            ],
        ),
        compiler_params=pltpu.CompilerParams(
            # Recurrence across time blocks MUST stay sequential.
            dimension_semantics=("arbitrary",),
        ),
    )(e_tm, h0, wih_p, whh_p, wfc_p, b_rnn, bfc_p)

    # Batch-first logits (single cheap transpose of the small logits tensor).
    logits = jnp.transpose(logits_tm, (1, 0, 2))[:B, :T, :V]
    h_out = h_last[:B, :H][None]
    return logits, h_out


# -----------------------------------------------------------------------------
# Pure-JAX reference (for correctness check).
# -----------------------------------------------------------------------------
def char_rnn_reference(x, h, params):
    embed_w, wih, whh, bih, bhh, wfc, bfc = params
    e = jnp.take(embed_w, x, axis=0)              # (B, T, E)

    def step(h_prev, x_t):
        h_new = jnp.tanh(x_t @ wih + bih[0] + h_prev @ whh + bhh[0])
        return h_new, h_new

    h_last, hs = jax.lax.scan(step, h[0], jnp.transpose(e, (1, 0, 2)))
    out = jnp.transpose(hs, (1, 0, 2))            # (B, T, H)
    logits = out @ wfc + bfc[0]
    return logits, h_last[None]


if __name__ == "__main__":
    # Small shapes consistent with the module (embed=128, hidden=256, 1 layer).
    vocab_size = 96
    embed_size = 128
    hidden_size = 256
    num_layers = 1
    B, T = 4, 12

    key = jax.random.PRNGKey(0)
    k_emb, k_wih, k_whh, k_bih, k_bhh, k_wfc, k_bfc, k_x = jax.random.split(key, 8)

    # Parameters stored transposed where convenient for right-multiplication.
    embed_w = jax.random.normal(k_emb, (vocab_size, embed_size), jnp.float32) * 0.1
    wih = jax.random.normal(k_wih, (embed_size, hidden_size), jnp.float32) * 0.1   # W_ih^T
    whh = jax.random.normal(k_whh, (hidden_size, hidden_size), jnp.float32) * 0.1  # W_hh^T
    bih = jax.random.normal(k_bih, (1, hidden_size), jnp.float32) * 0.1
    bhh = jax.random.normal(k_bhh, (1, hidden_size), jnp.float32) * 0.1
    wfc = jax.random.normal(k_wfc, (hidden_size, vocab_size), jnp.float32) * 0.1   # W_fc^T
    bfc = jax.random.normal(k_bfc, (1, vocab_size), jnp.float32) * 0.1
    params = (embed_w, wih, whh, bih, bhh, wfc, bfc)

    # Inputs: token ids + zero initial hidden state (PyTorch h=None default).
    x = jax.random.randint(k_x, (B, T), 0, vocab_size, dtype=jnp.int32)
    h0 = jnp.zeros((num_layers, B, hidden_size), jnp.float32)

    logits, h_out = char_rnn_forward(x, h0, params)
    logits, h_out = jax.block_until_ready((logits, h_out))

    # Sanity check against the pure-JAX reference.
    ref_logits, ref_h = char_rnn_reference(x, h0, params)
    assert logits.shape == (B, T, vocab_size)
    assert h_out.shape == (num_layers, B, hidden_size)
    assert jnp.allclose(logits, ref_logits, atol=1e-4, rtol=1e-4)
    assert jnp.allclose(h_out, ref_h, atol=1e-4, rtol=1e-4)

    print("KERNEL_OK")
</pallas_src>

<mosaic_0001>
module attributes {stable_mosaic.version = 11 : i64} {
  func.func @kernel(%arg0: i32, %arg1: memref<12x8x128xf32, #tpu.memory_space<vmem>>, %arg2: memref<8x256xf32, #tpu.memory_space<vmem>>, %arg3: memref<128x256xf32, #tpu.memory_space<vmem>>, %arg4: memref<256x256xf32, #tpu.memory_space<vmem>>, %arg5: memref<256x128xf32, #tpu.memory_space<vmem>>, %arg6: memref<1x256xf32, #tpu.memory_space<vmem>>, %arg7: memref<1x128xf32, #tpu.memory_space<vmem>>, %arg8: memref<12x8x128xf32, #tpu.memory_space<vmem>>, %arg9: memref<8x256xf32, #tpu.memory_space<vmem>>, %arg10: memref<8x256xf32, #tpu.memory_space<vmem>>, %arg11: memref<12x8x256xf32, #tpu.memory_space<vmem>>, %arg12: memref<12x8x256xf32, #tpu.memory_space<vmem>>) attributes {dimension_semantics = [#tpu.dimension_semantics<arbitrary>], iteration_bounds = array<i64: 1>, scalar_prefetch = 0 : i64, scratch_operands = 3 : i64, tpu.core_type = #tpu.core_type<tc>, window_params = [{transform_indices = @transform_0, window_bounds = array<i64: 12, 8, 128>}, {pipeline_mode = #tpu.pipeline_mode<synchronous>, transform_indices = @transform_1, window_bounds = array<i64: 8, 256>}, {pipeline_mode = #tpu.pipeline_mode<synchronous>, transform_indices = @transform_2, window_bounds = array<i64: 128, 256>}, {pipeline_mode = #tpu.pipeline_mode<synchronous>, transform_indices = @transform_3, window_bounds = array<i64: 256, 256>}, {pipeline_mode = #tpu.pipeline_mode<synchronous>, transform_indices = @transform_4, window_bounds = array<i64: 256, 128>}, {pipeline_mode = #tpu.pipeline_mode<synchronous>, transform_indices = @transform_5, window_bounds = array<i64: 1, 256>}, {pipeline_mode = #tpu.pipeline_mode<synchronous>, transform_indices = @transform_6, window_bounds = array<i64: 1, 128>}, {transform_indices = @transform_7, window_bounds = array<i64: 12, 8, 128>}, {pipeline_mode = #tpu.pipeline_mode<synchronous>, transform_indices = @transform_8, window_bounds = array<i64: 8, 256>}]} {
    %c0_i32 = arith.constant 0 : i32
    %0 = arith.cmpi eq, %arg0, %c0_i32 : i32
    %1 = arith.extui %0 : i1 to i32
    %c0_i32_0 = arith.constant 0 : i32
    %2 = arith.cmpi ne, %1, %c0_i32_0 : i32
    scf.if %2 {
      %c0_112 = arith.constant 0 : index
      %c0_113 = arith.constant 0 : index
      %158 = vector.load %arg2[%c0_112, %c0_113] : memref<8x256xf32, #tpu.memory_space<vmem>>, vector<8x256xf32>
      %c0_114 = arith.constant 0 : index
      %c0_115 = arith.constant 0 : index
      %159 = vector.load %arg10[%c0_114, %c0_115] : memref<8x256xf32, #tpu.memory_space<vmem>>, vector<8x256xf32>
      tpu.vector_store %arg10[%c0_114, %c0_115], %158 {strides = array<i32>} : memref<8x256xf32, #tpu.memory_space<vmem>>, vector<8x256xf32>,
    } else {
    }
    %c0 = arith.constant 0 : index
    %c0_1 = arith.constant 0 : index
    %c0_2 = arith.constant 0 : index
    %3 = vector.load %arg1[%c0, %c0_1, %c0_2] : memref<12x8x128xf32, #tpu.memory_space<vmem>>, vector<12x8x128xf32>
    %4 = vector.shape_cast %3 : vector<12x8x128xf32> to vector<96x128xf32>
    %c0_3 = arith.constant 0 : index
    %c0_4 = arith.constant 0 : index
    %5 = vector.load %arg3[%c0_3, %c0_4] : memref<128x256xf32, #tpu.memory_space<vmem>>, vector<128x256xf32>
    %cst = arith.constant dense<0.000000e+00> : vector<96x256xf32>
    %6 = tpu.matmul %4, %5, %cst {dimension_numbers = #tpu.dot_dimension_numbers<[1], [0], [0], [1], [0, 0, 1, 1], [], []>} : vector<96x128xf32>, vector<128x256xf32>, vector<96x256xf32> -> vector<96x256xf32>
    %c0_5 = arith.constant 0 : index
    %c0_6 = arith.constant 0 : index
    %7 = vector.load %arg6[%c0_5, %c0_6] : memref<1x256xf32, #tpu.memory_space<vmem>>, vector<1x256xf32>
    %8 = vector.broadcast %7 : vector<1x256xf32> to vector<96x256xf32>
    %9 = arith.addf %6, %8 : vector<96x256xf32>
    %10 = vector.shape_cast %9 : vector<96x256xf32> to vector<12x8x256xf32>
    %c0_7 = arith.constant 0 : index
    %c0_8 = arith.constant 0 : index
    %c0_9 = arith.constant 0 : index
    %11 = vector.load %arg11[%c0_7, %c0_8, %c0_9] : memref<12x8x256xf32, #tpu.memory_space<vmem>>, vector<12x8x256xf32>
    tpu.vector_store %arg11[%c0_7, %c0_8, %c0_9], %10 {strides = array<i32>} : memref<12x8x256xf32, #tpu.memory_space<vmem>>, vector<12x8x256xf32>,
    %c0_10 = arith.constant 0 : index
    %c0_11 = arith.constant 0 : index
    %12 = vector.load %arg10[%c0_10, %c0_11] : memref<8x256xf32, #tpu.memory_space<vmem>>, vector<8x256xf32>
    %c0_i32_12 = arith.constant 0 : i32
    %c0_13 = arith.constant 0 : index
    %c0_14 = arith.constant 0 : index
    %13 = vector.load %arg4[%c0_13, %c0_14] : memref<256x256xf32, #tpu.memory_space<vmem>>, vector<256x256xf32>
    %cst_15 = arith.constant dense<0.000000e+00> : vector<8x256xf32>
    %14 = tpu.matmul %12, %13, %cst_15 {dimension_numbers = #tpu.dot_dimension_numbers<[1], [0], [0], [1], [0, 0, 1, 1], [], []>} : vector<8x256xf32>, vector<256x256xf32>, vector<8x256xf32> -> vector<8x256xf32>
    %15 = arith.index_cast %c0_i32_12 : i32 to index
    %c0_16 = arith.constant 0 : index
    %c0_17 = arith.constant 0 : index
    %16 = vector.load %arg11[%15, %c0_16, %c0_17] : memref<12x8x256xf32, #tpu.memory_space<vmem>>, vector<1x8x256xf32>
    %17 = vector.shape_cast %16 : vector<1x8x256xf32> to vector<8x256xf32>
    %18 = arith.addf %14, %17 : vector<8x256xf32>
    %19 = math.tanh %18 : vector<8x256xf32>
    %20 = arith.index_cast %c0_i32_12 : i32 to index
    %c0_18 = arith.constant 0 : index
    %c0_19 = arith.constant 0 : index
    %21 = vector.load %arg12[%20, %c0_18, %c0_19] : memref<12x8x256xf32, #tpu.memory_space<vmem>>, vector<1x8x256xf32>
    %22 = vector.shape_cast %21 : vector<1x8x256xf32> to vector<8x256xf32>
    %23 = vector.shape_cast %19 : vector<8x256xf32> to vector<1x8x256xf32>
    tpu.vector_store %arg12[%20, %c0_18, %c0_19], %23 {strides = array<i32>} : memref<12x8x256xf32, #tpu.memory_space<vmem>>, vector<1x8x256xf32>,
    %c1_i32 = arith.constant 1 : i32
    %c0_20 = arith.constant 0 : index
    %c0_21 = arith.constant 0 : index
    %24 = vector.load %arg4[%c0_20, %c0_21] : memref<256x256xf32, #tpu.memory_space<vmem>>, vector<256x256xf32>
    %cst_22 = arith.constant dense<0.000000e+00> : vector<8x256xf32>
    %25 = tpu.matmul %19, %24, %cst_22 {dimension_numbers = #tpu.dot_dimension_numbers<[1], [0], [0], [1], [0, 0, 1, 1], [], []>} : vector<8x256xf32>, vector<256x256xf32>, vector<8x256xf32> -> vector<8x256xf32>
    %26 = arith.index_cast %c1_i32 : i32 to index
    %c0_23 = arith.constant 0 : index
    %c0_24 = arith.constant 0 : index
    %27 = vector.load %arg11[%26, %c0_23, %c0_24] : memref<12x8x256xf32, #tpu.memory_space<vmem>>, vector<1x8x256xf32>
    %28 = vector.shape_cast %27 : vector<1x8x256xf32> to vector<8x256xf32>
    %29 = arith.addf %25, %28 : vector<8x256xf32>
    %30 = math.tanh %29 : vector<8x256xf32>
    %31 = arith.index_cast %c1_i32 : i32 to index
    %c0_25 = arith.constant 0 : index
    %c0_26 = arith.constant 0 : index
    %32 = vector.load %arg12[%31, %c0_25, %c0_26] : memref<12x8x256xf32, #tpu.memory_space<vmem>>, vector<1x8x256xf32>
    %33 = vector.shape_cast %32 : vector<1x8x256xf32> to vector<8x256xf32>
    %34 = vector.shape_cast %30 : vector<8x256xf32> to vector<1x8x256xf32>
    tpu.vector_store %arg12[%31, %c0_25, %c0_26], %34 {strides = array<i32>} : memref<12x8x256xf32, #tpu.memory_space<vmem>>, vector<1x8x256xf32>,
    %c2_i32 = arith.constant 2 : i32
    %c0_27 = arith.constant 0 : index
    %c0_28 = arith.constant 0 : index
    %35 = vector.load %arg4[%c0_27, %c0_28] : memref<256x256xf32, #tpu.memory_space<vmem>>, vector<256x256xf32>
    %cst_29 = arith.constant dense<0.000000e+00> : vector<8x256xf32>
    %36 = tpu.matmul %30, %35, %cst_29 {dimension_numbers = #tpu.dot_dimension_numbers<[1], [0], [0], [1], [0, 0, 1, 1], [], []>} : vector<8x256xf32>, vector<256x256xf32>, vector<8x256xf32> -> vector<8x256xf32>
    %37 = arith.index_cast %c2_i32 : i32 to index
    %c0_30 = arith.constant 0 : index
    %c0_31 = arith.constant 0 : index
    %38 = vector.load %arg11[%37, %c0_30, %c0_31] : memref<12x8x256xf32, #tpu.memory_space<vmem>>, vector<1x8x256xf32>
    %39 = vector.shape_cast %38 : vector<1x8x256xf32> to vector<8x256xf32>
    %40 = arith.addf %36, %39 : vector<8x256xf32>
    %41 = math.tanh %40 : vector<8x256xf32>
    %42 = arith.index_cast %c2_i32 : i32 to index
    %c0_32 = arith.constant 0 : index
    %c0_33 = arith.constant 0 : index
    %43 = vector.load %arg12[%42, %c0_32, %c0_33] : memref<12x8x256xf32, #tpu.memory_space<vmem>>, vector<1x8x256xf32>
    %44 = vector.shape_cast %43 : vector<1x8x256xf32> to vector<8x256xf32>
    %45 = vector.shape_cast %41 : vector<8x256xf32> to vector<1x8x256xf32>
    tpu.vector_store %arg12[%42, %c0_32, %c0_33], %45 {strides = array<i32>} : memref<12x8x256xf32, #tpu.memory_space<vmem>>, vector<1x8x256xf32>,
    %c3_i32 = arith.constant 3 : i32
    %c0_34 = arith.constant 0 : index
    %c0_35 = arith.constant 0 : index
    %46 = vector.load %arg4[%c0_34, %c0_35] : memref<256x256xf32, #tpu.memory_space<vmem>>, vector<256x256xf32>
    %cst_36 = arith.constant dense<0.000000e+00> : vector<8x256xf32>
    %47 = tpu.matmul %41, %46, %cst_36 {dimension_numbers = #tpu.dot_dimension_numbers<[1], [0], [0], [1], [0, 0, 1, 1], [], []>} : vector<8x256xf32>, vector<256x256xf32>, vector<8x256xf32> -> vector<8x256xf32>
    %48 = arith.index_cast %c3_i32 : i32 to index
    %c0_37 = arith.constant 0 : index
    %c0_38 = arith.constant 0 : index
    %49 = vector.load %arg11[%48, %c0_37, %c0_38] : memref<12x8x256xf32, #tpu.memory_space<vmem>>, vector<1x8x256xf32>
    %50 = vector.shape_cast %49 : vector<1x8x256xf32> to vector<8x256xf32>
    %51 = arith.addf %47, %50 : vector<8x256xf32>
    %52 = math.tanh %51 : vector<8x256xf32>
    %53 = arith.index_cast %c3_i32 : i32 to index
    %c0_39 = arith.constant 0 : index
    %c0_40 = arith.constant 0 : index
    %54 = vector.load %arg12[%53, %c0_39, %c0_40] : memref<12x8x256xf32, #tpu.memory_space<vmem>>, vector<1x8x256xf32>
    %55 = vector.shape_cast %54 : vector<1x8x256xf32> to vector<8x256xf32>
    %56 = vector.shape_cast %52 : vector<8x256xf32> to vector<1x8x256xf32>
    tpu.vector_store %arg12[%53, %c0_39, %c0_40], %56 {strides = array<i32>} : memref<12x8x256xf32, #tpu.memory_space<vmem>>, vector<1x8x256xf32>,
    %c4_i32 = arith.constant 4 : i32
    %c0_41 = arith.constant 0 : index
    %c0_42 = arith.constant 0 : index
    %57 = vector.load %arg4[%c0_41, %c0_42] : memref<256x256xf32, #tpu.memory_space<vmem>>, vector<256x256xf32>
    %cst_43 = arith.constant dense<0.000000e+00> : vector<8x256xf32>
    %58 = tpu.matmul %52, %57, %cst_43 {dimension_numbers = #tpu.dot_dimension_numbers<[1], [0], [0], [1], [0, 0, 1, 1], [], []>} : vector<8x256xf32>, vector<256x256xf32>, vector<8x256xf32> -> vector<8x256xf32>
    %59 = arith.index_cast %c4_i32 : i32 to index
    %c0_44 = arith.constant 0 : index
    %c0_45 = arith.constant 0 : index
    %60 = vector.load %arg11[%59, %c0_44, %c0_45] : memref<12x8x256xf32, #tpu.memory_space<vmem>>, vector<1x8x256xf32>
    %61 = vector.shape_cast %60 : vector<1x8x256xf32> to vector<8x256xf32>
    %62 = arith.addf %58, %61 : vector<8x256xf32>
    %63 = math.tanh %62 : vector<8x256xf32>
    %64 = arith.index_cast %c4_i32 : i32 to index
    %c0_46 = arith.constant 0 : index
    %c0_47 = arith.constant 0 : index
    %65 = vector.load %arg12[%64, %c0_46, %c0_47] : memref<12x8x256xf32, #tpu.memory_space<vmem>>, vector<1x8x256xf32>
    %66 = vector.shape_cast %65 : vector<1x8x256xf32> to vector<8x256xf32>
    %67 = vector.shape_cast %63 : vector<8x256xf32> to vector<1x8x256xf32>
    tpu.vector_store %arg12[%64, %c0_46, %c0_47], %67 {strides = array<i32>} : memref<12x8x256xf32, #tpu.memory_space<vmem>>, vector<1x8x256xf32>,
    %c5_i32 = arith.constant 5 : i32
    %c0_48 = arith.constant 0 : index
    %c0_49 = arith.constant 0 : index
    %68 = vector.load %arg4[%c0_48, %c0_49] : memref<256x256xf32, #tpu.memory_space<vmem>>, vector<256x256xf32>
    %cst_50 = arith.constant dense<0.000000e+00> : vector<8x256xf32>
    %69 = tpu.matmul %63, %68, %cst_50 {dimension_numbers = #tpu.dot_dimension_numbers<[1], [0], [0], [1], [0, 0, 1, 1], [], []>} : vector<8x256xf32>, vector<256x256xf32>, vector<8x256xf32> -> vector<8x256xf32>
    %70 = arith.index_cast %c5_i32 : i32 to index
    %c0_51 = arith.constant 0 : index
    %c0_52 = arith.constant 0 : index
    %71 = vector.load %arg11[%70, %c0_51, %c0_52] : memref<12x8x256xf32, #tpu.memory_space<vmem>>, vector<1x8x256xf32>
    %72 = vector.shape_cast %71 : vector<1x8x256xf32> to vector<8x256xf32>
    %73 = arith.addf %69, %72 : vector<8x256xf32>
    %74 = math.tanh %73 : vector<8x256xf32>
    %75 = arith.index_cast %c5_i32 : i32 to index
    %c0_53 = arith.constant 0 : index
    %c0_54 = arith.constant 0 : index
    %76 = vector.load %arg12[%75, %c0_53, %c0_54] : memref<12x8x256xf32, #tpu.memory_space<vmem>>, vector<1x8x256xf32>
    %77 = vector.shape_cast %76 : vector<1x8x256xf32> to vector<8x256xf32>
    %78 = vector.shape_cast %74 : vector<8x256xf32> to vector<1x8x256xf32>
    tpu.vector_store %arg12[%75, %c0_53, %c0_54], %78 {strides = array<i32>} : memref<12x8x256xf32, #tpu.memory_space<vmem>>, vector<1x8x256xf32>,
    %c6_i32 = arith.constant 6 : i32
    %c0_55 = arith.constant 0 : index
    %c0_56 = arith.constant 0 : index
    %79 = vector.load %arg4[%c0_55, %c0_56] : memref<256x256xf32, #tpu.memory_space<vmem>>, vector<256x256xf32>
    %cst_57 = arith.constant dense<0.000000e+00> : vector<8x256xf32>
    %80 = tpu.matmul %74, %79, %cst_57 {dimension_numbers = #tpu.dot_dimension_numbers<[1], [0], [0], [1], [0, 0, 1, 1], [], []>} : vector<8x256xf32>, vector<256x256xf32>, vector<8x256xf32> -> vector<8x256xf32>
    %81 = arith.index_cast %c6_i32 : i32 to index
    %c0_58 = arith.constant 0 : index
    %c0_59 = arith.constant 0 : index
    %82 = vector.load %arg11[%81, %c0_58, %c0_59] : memref<12x8x256xf32, #tpu.memory_space<vmem>>, vector<1x8x256xf32>
    %83 = vector.shape_cast %82 : vector<1x8x256xf32> to vector<8x256xf32>
    %84 = arith.addf %80, %83 : vector<8x256xf32>
    %85 = math.tanh %84 : vector<8x256xf32>
    %86 = arith.index_cast %c6_i32 : i32 to index
    %c0_60 = arith.constant 0 : index
    %c0_61 = arith.constant 0 : index
    %87 = vector.load %arg12[%86, %c0_60, %c0_61] : memref<12x8x256xf32, #tpu.memory_space<vmem>>, vector<1x8x256xf32>
    %88 = vector.shape_cast %87 : vector<1x8x256xf32> to vector<8x256xf32>
    %89 = vector.shape_cast %85 : vector<8x256xf32> to vector<1x8x256xf32>
    tpu.vector_store %arg12[%86, %c0_60, %c0_61], %89 {strides = array<i32>} : memref<12x8x256xf32, #tpu.memory_space<vmem>>, vector<1x8x256xf32>,
    %c7_i32 = arith.constant 7 : i32
    %c0_62 = arith.constant 0 : index
    %c0_63 = arith.constant 0 : index
    %90 = vector.load %arg4[%c0_62, %c0_63] : memref<256x256xf32, #tpu.memory_space<vmem>>, vector<256x256xf32>
    %cst_64 = arith.constant dense<0.000000e+00> : vector<8x256xf32>
    %91 = tpu.matmul %85, %90, %cst_64 {dimension_numbers = #tpu.dot_dimension_numbers<[1], [0], [0], [1], [0, 0, 1, 1], [], []>} : vector<8x256xf32>, vector<256x256xf32>, vector<8x256xf32> -> vector<8x256xf32>
    %92 = arith.index_cast %c7_i32 : i32 to index
    %c0_65 = arith.constant 0 : index
    %c0_66 = arith.constant 0 : index
    %93 = vector.load %arg11[%92, %c0_65, %c0_66] : memref<12x8x256xf32, #tpu.memory_space<vmem>>, vector<1x8x256xf32>
    %94 = vector.shape_cast %93 : vector<1x8x256xf32> to vector<8x256xf32>
    %95 = arith.addf %91, %94 : vector<8x256xf32>
    %96 = math.tanh %95 : vector<8x256xf32>
    %97 = arith.index_cast %c7_i32 : i32 to index
    %c0_67 = arith.constant 0 : index
    %c0_68 = arith.constant 0 : index
    %98 = vector.load %arg12[%97, %c0_67, %c0_68] : memref<12x8x256xf32, #tpu.memory_space<vmem>>, vector<1x8x256xf32>
    %99 = vector.shape_cast %98 : vector<1x8x256xf32> to vector<8x256xf32>
    %100 = vector.shape_cast %96 : vector<8x256xf32> to vector<1x8x256xf32>
    tpu.vector_store %arg12[%97, %c0_67, %c0_68], %100 {strides = array<i32>} : memref<12x8x256xf32, #tpu.memory_space<vmem>>, vector<1x8x256xf32>,
    %c8_i32 = arith.constant 8 : i32
    %c0_69 = arith.constant 0 : index
    %c0_70 = arith.constant 0 : index
    %101 = vector.load %arg4[%c0_69, %c0_70] : memref<256x256xf32, #tpu.memory_space<vmem>>, vector<256x256xf32>
    %cst_71 = arith.constant dense<0.000000e+00> : vector<8x256xf32>
    %102 = tpu.matmul %96, %101, %cst_71 {dimension_numbers = #tpu.dot_dimension_numbers<[1], [0], [0], [1], [0, 0, 1, 1], [], []>} : vector<8x256xf32>, vector<256x256xf32>, vector<8x256xf32> -> vector<8x256xf32>
    %103 = arith.index_cast %c8_i32 : i32 to index
    %c0_72 = arith.constant 0 : index
    %c0_73 = arith.constant 0 : index
    %104 = vector.load %arg11[%103, %c0_72, %c0_73] : memref<12x8x256xf32, #tpu.memory_space<vmem>>, vector<1x8x256xf32>
    %105 = vector.shape_cast %104 : vector<1x8x256xf32> to vector<8x256xf32>
    %106 = arith.addf %102, %105 : vector<8x256xf32>
    %107 = math.tanh %106 : vector<8x256xf32>
    %108 = arith.index_cast %c8_i32 : i32 to index
    %c0_74 = arith.constant 0 : index
    %c0_75 = arith.constant 0 : index
    %109 = vector.load %arg12[%108, %c0_74, %c0_75] : memref<12x8x256xf32, #tpu.memory_space<vmem>>, vector<1x8x256xf32>
    %110 = vector.shape_cast %109 : vector<1x8x256xf32> to vector<8x256xf32>
    %111 = vector.shape_cast %107 : vector<8x256xf32> to vector<1x8x256xf32>
    tpu.vector_store %arg12[%108, %c0_74, %c0_75], %111 {strides = array<i32>} : memref<12x8x256xf32, #tpu.memory_space<vmem>>, vector<1x8x256xf32>,
    %c9_i32 = arith.constant 9 : i32
    %c0_76 = arith.constant 0 : index
    %c0_77 = arith.constant 0 : index
    %112 = vector.load %arg4[%c0_76, %c0_77] : memref<256x256xf32, #tpu.memory_space<vmem>>, vector<256x256xf32>
    %cst_78 = arith.constant dense<0.000000e+00> : vector<8x256xf32>
    %113 = tpu.matmul %107, %112, %cst_78 {dimension_numbers = #tpu.dot_dimension_numbers<[1], [0], [0], [1], [0, 0, 1, 1], [], []>} : vector<8x256xf32>, vector<256x256xf32>, vector<8x256xf32> -> vector<8x256xf32>
    %114 = arith.index_cast %c9_i32 : i32 to index
    %c0_79 = arith.constant 0 : index
    %c0_80 = arith.constant 0 : index
    %115 = vector.load %arg11[%114, %c0_79, %c0_80] : memref<12x8x256xf32, #tpu.memory_space<vmem>>, vector<1x8x256xf32>
    %116 = vector.shape_cast %115 : vector<1x8x256xf32> to vector<8x256xf32>
    %117 = arith.addf %113, %116 : vector<8x256xf32>
    %118 = math.tanh %117 : vector<8x256xf32>
    %119 = arith.index_cast %c9_i32 : i32 to index
    %c0_81 = arith.constant 0 : index
    %c0_82 = arith.constant 0 : index
    %120 = vector.load %arg12[%119, %c0_81, %c0_82] : memref<12x8x256xf32, #tpu.memory_space<vmem>>, vector<1x8x256xf32>
    %121 = vector.shape_cast %120 : vector<1x8x256xf32> to vector<8x256xf32>
    %122 = vector.shape_cast %118 : vector<8x256xf32> to vector<1x8x256xf32>
    tpu.vector_store %arg12[%119, %c0_81, %c0_82], %122 {strides = array<i32>} : memref<12x8x256xf32, #tpu.memory_space<vmem>>, vector<1x8x256xf32>,
    %c10_i32 = arith.constant 10 : i32
    %c0_83 = arith.constant 0 : index
    %c0_84 = arith.constant 0 : index
    %123 = vector.load %arg4[%c0_83, %c0_84] : memref<256x256xf32, #tpu.memory_space<vmem>>, vector<256x256xf32>
    %cst_85 = arith.constant dense<0.000000e+00> : vector<8x256xf32>
    %124 = tpu.matmul %118, %123, %cst_85 {dimension_numbers = #tpu.dot_dimension_numbers<[1], [0], [0], [1], [0, 0, 1, 1], [], []>} : vector<8x256xf32>, vector<256x256xf32>, vector<8x256xf32> -> vector<8x256xf32>
    %125 = arith.index_cast %c10_i32 : i32 to index
    %c0_86 = arith.constant 0 : index
    %c0_87 = arith.constant 0 : index
    %126 = vector.load %arg11[%125, %c0_86, %c0_87] : memref<12x8x256xf32, #tpu.memory_space<vmem>>, vector<1x8x256xf32>
    %127 = vector.shape_cast %126 : vector<1x8x256xf32> to vector<8x256xf32>
    %128 = arith.addf %124, %127 : vector<8x256xf32>
    %129 = math.tanh %128 : vector<8x256xf32>
    %130 = arith.index_cast %c10_i32 : i32 to index
    %c0_88 = arith.constant 0 : index
    %c0_89 = arith.constant 0 : index
    %131 = vector.load %arg12[%130, %c0_88, %c0_89] : memref<12x8x256xf32, #tpu.memory_space<vmem>>, vector<1x8x256xf32>
    %132 = vector.shape_cast %131 : vector<1x8x256xf32> to vector<8x256xf32>
    %133 = vector.shape_cast %129 : vector<8x256xf32> to vector<1x8x256xf32>
    tpu.vector_store %arg12[%130, %c0_88, %c0_89], %133 {strides = array<i32>} : memref<12x8x256xf32, #tpu.memory_space<vmem>>, vector<1x8x256xf32>,
    %c11_i32 = arith.constant 11 : i32
    %c0_90 = arith.constant 0 : index
    %c0_91 = arith.constant 0 : index
    %134 = vector.load %arg4[%c0_90, %c0_91] : memref<256x256xf32, #tpu.memory_space<vmem>>, vector<256x256xf32>
    %cst_92 = arith.constant dense<0.000000e+00> : vector<8x256xf32>
    %135 = tpu.matmul %129, %134, %cst_92 {dimension_numbers = #tpu.dot_dimension_numbers<[1], [0], [0], [1], [0, 0, 1, 1], [], []>} : vector<8x256xf32>, vector<256x256xf32>, vector<8x256xf32> -> vector<8x256xf32>
    %136 = arith.index_cast %c11_i32 : i32 to index
    %c0_93 = arith.constant 0 : index
    %c0_94 = arith.constant 0 : index
    %137 = vector.load %arg11[%136, %c0_93, %c0_94] : memref<12x8x256xf32, #tpu.memory_space<vmem>>, vector<1x8x256xf32>
    %138 = vector.shape_cast %137 : vector<1x8x256xf32> to vector<8x256xf32>
    %139 = arith.addf %135, %138 : vector<8x256xf32>
    %140 = math.tanh %139 : vector<8x256xf32>
    %141 = arith.index_cast %c11_i32 : i32 to index
    %c0_95 = arith.constant 0 : index
    %c0_96 = arith.constant 0 : index
    %142 = vector.load %arg12[%141, %c0_95, %c0_96] : memref<12x8x256xf32, #tpu.memory_space<vmem>>, vector<1x8x256xf32>
    %143 = vector.shape_cast %142 : vector<1x8x256xf32> to vector<8x256xf32>
    %144 = vector.shape_cast %140 : vector<8x256xf32> to vector<1x8x256xf32>
    tpu.vector_store %arg12[%141, %c0_95, %c0_96], %144 {strides = array<i32>} : memref<12x8x256xf32, #tpu.memory_space<vmem>>, vector<1x8x256xf32>,
    %c12_i32 = arith.constant 12 : i32
    %c0_97 = arith.constant 0 : index
    %c0_98 = arith.constant 0 : index
    %145 = vector.load %arg10[%c0_97, %c0_98] : memref<8x256xf32, #tpu.memory_space<vmem>>, vector<8x256xf32>
    tpu.vector_store %arg10[%c0_97, %c0_98], %140 {strides = array<i32>} : memref<8x256xf32, #tpu.memory_space<vmem>>, vector<8x256xf32>,
    %c0_99 = arith.constant 0 : index
    %c0_100 = arith.constant 0 : index
    %c0_101 = arith.constant 0 : index
    %146 = vector.load %arg12[%c0_99, %c0_100, %c0_101] : memref<12x8x256xf32, #tpu.memory_space<vmem>>, vector<12x8x256xf32>
    %147 = vector.shape_cast %146 : vector<12x8x256xf32> to vector<96x256xf32>
    %c0_102 = arith.constant 0 : index
    %c0_103 = arith.constant 0 : index
    %148 = vector.load %arg5[%c0_102, %c0_103] : memref<256x128xf32, #tpu.memory_space<vmem>>, vector<256x128xf32>
    %cst_104 = arith.constant dense<0.000000e+00> : vector<96x128xf32>
    %149 = tpu.matmul %147, %148, %cst_104 {dimension_numbers = #tpu.dot_dimension_numbers<[1], [0], [0], [1], [0, 0, 1, 1], [], []>} : vector<96x256xf32>, vector<256x128xf32>, vector<96x128xf32> -> vector<96x128xf32>
    %c0_105 = arith.constant 0 : index
    %c0_106 = arith.constant 0 : index
    %150 = vector.load %arg7[%c0_105, %c0_106] : memref<1x128xf32, #tpu.memory_space<vmem>>, vector<1x128xf32>
    %151 = vector.broadcast %150 : vector<1x128xf32> to vector<96x128xf32>
    %152 = arith.addf %149, %151 : vector<96x128xf32>
    %153 = vector.shape_cast %152 : vector<96x128xf32> to vector<12x8x128xf32>
    %c0_107 = arith.constant 0 : index
    %c0_108 = arith.constant 0 : index
    %c0_109 = arith.constant 0 : index
    %154 = vector.load %arg8[%c0_107, %c0_108, %c0_109] : memref<12x8x128xf32, #tpu.memory_space<vmem>>, vector<12x8x128xf32>
    tpu.vector_store %arg8[%c0_107, %c0_108, %c0_109], %153 {strides = array<i32>} : memref<12x8x128xf32, #tpu.memory_space<vmem>>, vector<12x8x128xf32>,
    %c0_i32_110 = arith.constant 0 : i32
    %155 = arith.cmpi eq, %arg0, %c0_i32_110 : i32
    %156 = arith.extui %155 : i1 to i32
    %c0_i32_111 = arith.constant 0 : i32
    %157 = arith.cmpi ne, %156, %c0_i32_111 : i32
    scf.if %157 {
      %c11 = arith.constant 11 : index
      %c0_112 = arith.constant 0 : index
      %c0_113 = arith.constant 0 : index
      %158 = vector.load %arg12[%c11, %c0_112, %c0_113] : memref<12x8x256xf32, #tpu.memory_space<vmem>>, vector<1x8x256xf32>
      %159 = vector.shape_cast %158 : vector<1x8x256xf32> to vector<8x256xf32>
      %c0_114 = arith.constant 0 : index
      %c0_115 = arith.constant 0 : index
      %160 = vector.load %arg9[%c0_114, %c0_115] : memref<8x256xf32, #tpu.memory_space<vmem>>, vector<8x256xf32>
      tpu.vector_store %arg9[%c0_114, %c0_115], %159 {strides = array<i32>} : memref<8x256xf32, #tpu.memory_space<vmem>>, vector<8x256xf32>,
    } else {
    }
    return
  }
  func.func @transform_0(%arg0: i32) -> (i32, i32, i32) {
    %c0_i32 = arith.constant 0 : i32
    %c0_i32_0 = arith.constant 0 : i32
    %c0_i32_1 = arith.constant 0 : i32
    return %arg0, %c0_i32, %c0_i32_0 : i32, i32, i32
  }
  func.func @transform_1(%arg0: i32) -> (i32, i32) {
    %c0_i32 = arith.constant 0 : i32
    %c0_i32_0 = arith.constant 0 : i32
    %c0_i32_1 = arith.constant 0 : i32
    return %c0_i32, %c0_i32_0 : i32, i32
  }
  func.func @transform_2(%arg0: i32) -> (i32, i32) {
    %c0_i32 = arith.constant 0 : i32
    %c0_i32_0 = arith.constant 0 : i32
    %c0_i32_1 = arith.constant 0 : i32
    return %c0_i32, %c0_i32_0 : i32, i32
  }
  func.func @transform_3(%arg0: i32) -> (i32, i32) {
    %c0_i32 = arith.constant 0 : i32
    %c0_i32_0 = arith.constant 0 : i32
    %c0_i32_1 = arith.constant 0 : i32
    return %c0_i32, %c0_i32_0 : i32, i32
  }
  func.func @transform_4(%arg0: i32) -> (i32, i32) {
    %c0_i32 = arith.constant 0 : i32
    %c0_i32_0 = arith.constant 0 : i32
    %c0_i32_1 = arith.constant 0 : i32
    return %c0_i32, %c0_i32_0 : i32, i32
  }
  func.func @transform_5(%arg0: i32) -> (i32, i32) {
    %c0_i32 = arith.constant 0 : i32
    %c0_i32_0 = arith.constant 0 : i32
    %c0_i32_1 = arith.constant 0 : i32
    return %c0_i32, %c0_i32_0 : i32, i32
  }
  func.func @transform_6(%arg0: i32) -> (i32, i32) {
    %c0_i32 = arith.constant 0 : i32
    %c0_i32_0 = arith.constant 0 : i32
    %c0_i32_1 = arith.constant 0 : i32
    return %c0_i32, %c0_i32_0 : i32, i32
  }
  func.func @transform_7(%arg0: i32) -> (i32, i32, i32) {
    %c0_i32 = arith.constant 0 : i32
    %c0_i32_0 = arith.constant 0 : i32
    %c0_i32_1 = arith.constant 0 : i32
    return %arg0, %c0_i32, %c0_i32_0 : i32, i32, i32
  }
  func.func @transform_8(%arg0: i32) -> (i32, i32) {
    %c0_i32 = arith.constant 0 : i32
    %c0_i32_0 = arith.constant 0 : i32
    %c0_i32_1 = arith.constant 0 : i32
    return %c0_i32, %c0_i32_0 : i32, i32
  }
}

</mosaic_0001>

<llo_original>
// kernel: char_rnn_forward.1
$region0: #{char_rnn_forward.1}
  #allocation0 [shape = 'u32[]', space=smem, size = 0x4, offset = 0x4, fixed_abs, tag = 'smem constant byte address 0x4 - core index']
  #allocation1 [shape = 'u32[72,128]{1,0:T(1,128)}', space=vmem, size = 0x9000, scoped, tag = 'internal scratch']
  #allocation2 [shape = 'f32[8,256]{1,0:T(8,128)}', space=vmem, size = 0x2000, scoped, tag = 'scratch operand']
  #allocation3 [shape = 'f32[12,8,256]{2,1,0:T(8,128)}', space=vmem, size = 0x18000, scoped, tag = 'scratch operand']
  #allocation4 [shape = 'f32[12,8,256]{2,1,0:T(8,128)}', space=vmem, size = 0x18000, scoped, tag = 'scratch operand']
  %s0 = inlined_call_operand.vmem [shape: f32[12,8,128], index: 0, kind: input, shape index: {}]
  %s1 = inlined_call_operand.vmem [shape: f32[8,256], index: 1, kind: input, shape index: {}]
  %s2 = inlined_call_operand.vmem [shape: f32[128,256], index: 2, kind: input, shape index: {}]
  %s3 = inlined_call_operand.vmem [shape: f32[256,256], index: 3, kind: input, shape index: {}]
  %s4 = inlined_call_operand.vmem [shape: f32[256,128], index: 4, kind: input, shape index: {}]
  %s5 = inlined_call_operand.vmem [shape: f32[1,256], index: 5, kind: input, shape index: {}]
  %s6 = inlined_call_operand.vmem [shape: f32[1,128], index: 6, kind: input, shape index: {}]
  %s7 = inlined_call_operand.vmem [shape: f32[12,8,128], index: 7, kind: output, shape index: {0}]
  %s8 = inlined_call_operand.vmem [shape: f32[8,256], index: 8, kind: output, shape index: {1}]
  %9 = xla_tuple %s7, %s8
  %s10 = sld [smem:[#allocation0]]
  $region54: #{char_rnn_forward.1} parent=0
    _
  %s12 = ssub.s32 1, %s10
  %s13 = scalar_select 0, %s12, %s10
  // Predicated region
  $region2: #{char_rnn_forward.1} parent=0 // pred_check
    _
  $region3: #{char_rnn_forward.1} parent=0 // pred_check_branch
    %15 = sbr.rel (0) target = $region5
  $region4: #{char_rnn_forward.1} parent=0 // pred_region
    _
  $region5: #{char_rnn_forward.1} parent=0 // pred_fallthru
    _
  // Predicated region
  $region6: #{char_rnn_forward.1} parent=0 // pred_check
    _
  $region7: #{char_rnn_forward.1} parent=0 // pred_check_branch
    %17 = sbr.rel (0) target = $region9
  $region8: #{char_rnn_forward.1} parent=0 // pred_region
    _
  $region9: #{char_rnn_forward.1} parent=0 // pred_fallthru
    _
  // Predicated region
  $region10: #{char_rnn_forward.1} parent=0 // pred_check
    _
  $region11: #{char_rnn_forward.1} parent=0 // pred_check_branch
    %19 = sbr.rel (0) target = $region13
  $region12: #{char_rnn_forward.1} parent=0 // pred_region
    _
  $region13: #{char_rnn_forward.1} parent=0 // pred_fallthru
    _
  // Predicated region
  $region14: #{char_rnn_forward.1} parent=0 // pred_check
    _
  $region15: #{char_rnn_forward.1} parent=0 // pred_check_branch
    %21 = sbr.rel (0) target = $region17
  $region16: #{char_rnn_forward.1} parent=0 // pred_region
    _
  $region17: #{char_rnn_forward.1} parent=0 // pred_fallthru
    _
  // Predicated region
  $region18: #{char_rnn_forward.1} parent=0 // pred_check
    _
  $region19: #{char_rnn_forward.1} parent=0 // pred_check_branch
    %23 = sbr.rel (0) target = $region21
  $region20: #{char_rnn_forward.1} parent=0 // pred_region
    _
  $region21: #{char_rnn_forward.1} parent=0 // pred_fallthru
    _
  // Predicated region
  $region22: #{char_rnn_forward.1} parent=0 // pred_check
    _
  $region23: #{char_rnn_forward.1} parent=0 // pred_check_branch
    %25 = sbr.rel (0) target = $region25
  $region24: #{char_rnn_forward.1} parent=0 // pred_region
    _
  $region25: #{char_rnn_forward.1} parent=0 // pred_fallthru
    _
  // Predicated region
  $region26: #{char_rnn_forward.1} parent=0 // pred_check
    _
  $region27: #{char_rnn_forward.1} parent=0 // pred_check_branch
    %27 = sbr.rel (0) target = $region29
  $region28: #{char_rnn_forward.1} parent=0 // pred_region
    _
  $region29: #{char_rnn_forward.1} parent=0 // pred_fallthru
    _
  %p28 = scmp.eq.s32.totalorder 0, 0
  // Predicated region
  $region30: #{char_rnn_forward.1} parent=0 // pred_check
    %p29 = pneg %p28
  $region31: #{char_rnn_forward.1} parent=0 // pred_check_branch
    %31 = sbr.rel (%p29) target = $region33
  $region32: #{char_rnn_forward.1} parent=0 // pred_region
    %v32 = vld [vmem:[%s1] sm:$0xff]
    %v33 = vld [vmem:[%s1 + $0x8] sm:$0xff]
    %34 = vst [vmem:[#allocation2] sm:$0xff] %v32
    %35 = vst [vmem:[#allocation2 + $0x8] sm:$0xff] %v33
  $region33: #{char_rnn_forward.1} parent=0 // pred_fallthru
    _
  %v36 = vld [vmem:[%s0] sm:$0xff]
  %v37 = vld [vmem:[%s0 + $0x8] sm:$0xff]
  %v38 = vld [vmem:[%s0 + $0x10] sm:$0xff]
  %v39 = vld [vmem:[%s0 + $0x18] sm:$0xff]
  %v40 = vld [vmem:[%s0 + $0x20] sm:$0xff]
  %v41 = vld [vmem:[%s0 + $0x28] sm:$0xff]
  %v42 = vld [vmem:[%s0 + $0x30] sm:$0xff]
  %v43 = vld [vmem:[%s0 + $0x38] sm:$0xff]
  %v44 = vld [vmem:[%s0 + $0x40] sm:$0xff]
  %v45 = vld [vmem:[%s0 + $0x48] sm:$0xff]
  %v46 = vld [vmem:[%s0 + $0x50] sm:$0xff]
  %v47 = vld [vmem:[%s0 + $0x58] sm:$0xff]
  %v48 = vld [vmem:[%s2] sm:$0xff]
  %v49 = vld [vmem:[%s2 + $0x8] sm:$0xff]
  %v50 = vld [vmem:[%s2 + $0x10] sm:$0xff]
  %v51 = vld [vmem:[%s2 + $0x18] sm:$0xff]
  %v52 = vld [vmem:[%s2 + $0x20] sm:$0xff]
  %v53 = vld [vmem:[%s2 + $0x28] sm:$0xff]
  %v54 = vld [vmem:[%s2 + $0x30] sm:$0xff]
  %v55 = vld [vmem:[%s2 + $0x38] sm:$0xff]
  %v56 = vld [vmem:[%s2 + $0x40] sm:$0xff]
  %v57 = vld [vmem:[%s2 + $0x48] sm:$0xff]
  %v58 = vld [vmem:[%s2 + $0x50] sm:$0xff]
  %v59 = vld [vmem:[%s2 + $0x58] sm:$0xff]
  %v60 = vld [vmem:[%s2 + $0x60] sm:$0xff]
  %v61 = vld [vmem:[%s2 + $0x68] sm:$0xff]
  %v62 = vld [vmem:[%s2 + $0x70] sm:$0xff]
  %v63 = vld [vmem:[%s2 + $0x78] sm:$0xff]
  %v64 = vld [vmem:[%s2 + $0x80] sm:$0xff]
  %v65 = vld [vmem:[%s2 + $0x88] sm:$0xff]
  %v66 = vld [vmem:[%s2 + $0x90] sm:$0xff]
  %v67 = vld [vmem:[%s2 + $0x98] sm:$0xff]
  %v68 = vld [vmem:[%s2 + $0xa0] sm:$0xff]
  %v69 = vld [vmem:[%s2 + $0xa8] sm:$0xff]
  %v70 = vld [vmem:[%s2 + $0xb0] sm:$0xff]
  %v71 = vld [vmem:[%s2 + $0xb8] sm:$0xff]
  %v72 = vld [vmem:[%s2 + $0xc0] sm:$0xff]
  %v73 = vld [vmem:[%s2 + $0xc8] sm:$0xff]
  %v74 = vld [vmem:[%s2 + $0xd0] sm:$0xff]
  %v75 = vld [vmem:[%s2 + $0xd8] sm:$0xff]
  %v76 = vld [vmem:[%s2 + $0xe0] sm:$0xff]
  %v77 = vld [vmem:[%s2 + $0xe8] sm:$0xff]
  %v78 = vld [vmem:[%s2 + $0xf0] sm:$0xff]
  %v79 = vld [vmem:[%s2 + $0xf8] sm:$0xff]
  %v80 = vld [vmem:[%s5] sm:$0x3]
  %v82 = vperm.slane %v80, 0
  %v83 = vperm.slane %v80, 1
  %86 = vmatpush.msra.mxu0 %v78
  %87 = vmatpush.msra.mxu0 %v76
  %88 = vmatpush.msra.mxu0 %v74
  %89 = vmatpush.msra.mxu0 %v72
  %90 = vmatpush.msra.mxu0 %v70
  %91 = vmatpush.msra.mxu0 %v68
  %92 = vmatpush.msra.mxu0 %v66
  %93 = vmatpush.msra.mxu0 %v64
  %94 = vmatpush.msra.mxu0 %v62
  %95 = vmatpush.msra.mxu0 %v60
  %96 = vmatpush.msra.mxu0 %v58
  %97 = vmatpush.msra.mxu0 %v56
  %98 = vmatpush.msra.mxu0 %v54
  %99 = vmatpush.msra.mxu0 %v52
  %100 = vmatpush.msra.mxu0 %v50
  %101 = vmatpush.msra.mxu0 %v48
  %102 = vmatmul.f32.gmra.mxu0 %v36
  %v103 = vpop.f32.mrf.mxu0
  %v104 = vadd.f32 %v82, %v103
  %105 = vmatmul.f32.gmra.mxu0 %v37
  %v106 = vpop.f32.mrf.mxu0
  %v107 = vadd.f32 %v82, %v106
  %108 = vmatmul.f32.gmra.mxu0 %v38
  %v109 = vpop.f32.mrf.mxu0
  %v110 = vadd.f32 %v82, %v109
  %111 = vmatmul.f32.gmra.mxu0 %v39
  %v112 = vpop.f32.mrf.mxu0
  %v113 = vadd.f32 %v82, %v112
  %114 = vmatmul.f32.gmra.mxu0 %v40
  %v115 = vpop.f32.mrf.mxu0
  %v116 = vadd.f32 %v82, %v115
  %117 = vmatmul.f32.gmra.mxu0 %v41
  %v118 = vpop.f32.mrf.mxu0
  %v119 = vadd.f32 %v82, %v118
  %120 = vmatmul.f32.gmra.mxu0 %v42
  %v121 = vpop.f32.mrf.mxu0
  %v122 = vadd.f32 %v82, %v121
  %123 = vmatmul.f32.gmra.mxu0 %v43
  %v124 = vpop.f32.mrf.mxu0
  %v125 = vadd.f32 %v82, %v124
  %126 = vmatmul.f32.gmra.mxu0 %v44
  %v127 = vpop.f32.mrf.mxu0
  %v128 = vadd.f32 %v82, %v127
  %129 = vmatmul.f32.gmra.mxu0 %v45
  %v130 = vpop.f32.mrf.mxu0
  %v131 = vadd.f32 %v82, %v130
  %132 = vmatmul.f32.gmra.mxu0 %v46
  %v133 = vpop.f32.mrf.mxu0
  %v134 = vadd.f32 %v82, %v133
  %135 = vmatmul.f32.gmra.mxu0 %v47
  %v136 = vpop.f32.mrf.mxu0
  %v137 = vadd.f32 %v82, %v136
  %138 = vdwg.mxu0
  %139 = vmatpush.msra.mxu0 %v79
  %140 = vmatpush.msra.mxu0 %v77
  %141 = vmatpush.msra.mxu0 %v75
  %142 = vmatpush.msra.mxu0 %v73
  %143 = vmatpush.msra.mxu0 %v71
  %144 = vmatpush.msra.mxu0 %v69
  %145 = vmatpush.msra.mxu0 %v67
  %146 = vmatpush.msra.mxu0 %v65
  %147 = vmatpush.msra.mxu0 %v63
  %148 = vmatpush.msra.mxu0 %v61
  %149 = vmatpush.msra.mxu0 %v59
  %150 = vmatpush.msra.mxu0 %v57
  %151 = vmatpush.msra.mxu0 %v55
  %152 = vmatpush.msra.mxu0 %v53
  %153 = vmatpush.msra.mxu0 %v51
  %154 = vmatpush.msra.mxu0 %v49
  %155 = vmatmul.f32.gmra.mxu0 %v36
  %v156 = vpop.f32.mrf.mxu0
  %v157 = vadd.f32 %v83, %v156
  %158 = vmatmul.f32.gmra.mxu0 %v37
  %v159 = vpop.f32.mrf.mxu0
  %v160 = vadd.f32 %v83, %v159
  %161 = vmatmul.f32.gmra.mxu0 %v38
  %v162 = vpop.f32.mrf.mxu0
  %v163 = vadd.f32 %v83, %v162
  %164 = vmatmul.f32.gmra.mxu0 %v39
  %v165 = vpop.f32.mrf.mxu0
  %v166 = vadd.f32 %v83, %v165
  %167 = vmatmul.f32.gmra.mxu0 %v40
  %v168 = vpop.f32.mrf.mxu0
  %v169 = vadd.f32 %v83, %v168
  %170 = vmatmul.f32.gmra.mxu0 %v41
  %v171 = vpop.f32.mrf.mxu0
  %v172 = vadd.f32 %v83, %v171
  %173 = vmatmul.f32.gmra.mxu0 %v42
  %v174 = vpop.f32.mrf.mxu0
  %v175 = vadd.f32 %v83, %v174
  %176 = vmatmul.f32.gmra.mxu0 %v43
  %v177 = vpop.f32.mrf.mxu0
  %v178 = vadd.f32 %v83, %v177
  %179 = vmatmul.f32.gmra.mxu0 %v44
  %v180 = vpop.f32.mrf.mxu0
  %v181 = vadd.f32 %v83, %v180
  %182 = vmatmul.f32.gmra.mxu0 %v45
  %v183 = vpop.f32.mrf.mxu0
  %v184 = vadd.f32 %v83, %v183
  %185 = vmatmul.f32.gmra.mxu0 %v46
  %v186 = vpop.f32.mrf.mxu0
  %v187 = vadd.f32 %v83, %v186
  %188 = vmatmul.f32.gmra.mxu0 %v47
  %v189 = vpop.f32.mrf.mxu0
  %v190 = vadd.f32 %v83, %v189
  %191 = vdwg.mxu0
  %192 = vst [vmem:[#allocation3] sm:$0xff] %v104
  %193 = vst [vmem:[#allocation3 + $0x8] sm:$0xff] %v157
  %194 = vst [vmem:[#allocation3 + $0x10] sm:$0xff] %v107
  %195 = vst [vmem:[#allocation3 + $0x18] sm:$0xff] %v160
  %196 = vst [vmem:[#allocation3 + $0x20] sm:$0xff] %v110
  %197 = vst [vmem:[#allocation3 + $0x28] sm:$0xff] %v163
  %198 = vst [vmem:[#allocation3 + $0x30] sm:$0xff] %v113
  %199 = vst [vmem:[#allocation3 + $0x38] sm:$0xff] %v166
  %200 = vst [vmem:[#allocation3 + $0x40] sm:$0xff] %v116
  %201 = vst [vmem:[#allocation3 + $0x48] sm:$0xff] %v169
  %202 = vst [vmem:[#allocation3 + $0x50] sm:$0xff] %v119
  %203 = vst [vmem:[#allocation3 + $0x58] sm:$0xff] %v172
  %204 = vst [vmem:[#allocation3 + $0x60] sm:$0xff] %v122
  %205 = vst [vmem:[#allocation3 + $0x68] sm:$0xff] %v175
  %206 = vst [vmem:[#allocation3 + $0x70] sm:$0xff] %v125
  %207 = vst [vmem:[#allocation3 + $0x78] sm:$0xff] %v178
  %208 = vst [vmem:[#allocation3 + $0x80] sm:$0xff] %v128
  %209 = vst [vmem:[#allocation3 + $0x88] sm:$0xff] %v181
  %210 = vst [vmem:[#allocation3 + $0x90] sm:$0xff] %v131
  %211 = vst [vmem:[#allocation3 + $0x98] sm:$0xff] %v184
  %212 = vst [vmem:[#allocation3 + $0xa0] sm:$0xff] %v134
  %213 = vst [vmem:[#allocation3 + $0xa8] sm:$0xff] %v187
  %214 = vst [vmem:[#allocation3 + $0xb0] sm:$0xff] %v137
  %215 = vst [vmem:[#allocation3 + $0xb8] sm:$0xff] %v190
  %v216 = vld [vmem:[#allocation2] sm:$0xff]
  %v217 = vld [vmem:[#allocation2 + $0x8] sm:$0xff]
  %v218 = vld [vmem:[%s3] sm:$0xff]
  %v219 = vld [vmem:[%s3 + $0x8] sm:$0xff]
  %v220 = vld [vmem:[%s3 + $0x10] sm:$0xff]
  %v221 = vld [vmem:[%s3 + $0x18] sm:$0xff]
  %v222 = vld [vmem:[%s3 + $0x20] sm:$0xff]
  %v223 = vld [vmem:[%s3 + $0x28] sm:$0xff]
  %v224 = vld [vmem:[%s3 + $0x30] sm:$0xff]
  %v225 = vld [vmem:[%s3 + $0x38] sm:$0xff]
  %v226 = vld [vmem:[%s3 + $0x40] sm:$0xff]
  %v227 = vld [vmem:[%s3 + $0x48] sm:$0xff]
  %v228 = vld [vmem:[%s3 + $0x50] sm:$0xff]
  %v229 = vld [vmem:[%s3 + $0x58] sm:$0xff]
  %v230 = vld [vmem:[%s3 + $0x60] sm:$0xff]
  %v231 = vld [vmem:[%s3 + $0x68] sm:$0xff]
  %v232 = vld [vmem:[%s3 + $0x70] sm:$0xff]
  %v233 = vld [vmem:[%s3 + $0x78] sm:$0xff]
  %v234 = vld [vmem:[%s3 + $0x80] sm:$0xff]
  %v235 = vld [vmem:[%s3 + $0x88] sm:$0xff]
  %v236 = vld [vmem:[%s3 + $0x90] sm:$0xff]
  %v237 = vld [vmem:[%s3 + $0x98] sm:$0xff]
  %v238 = vld [vmem:[%s3 + $0xa0] sm:$0xff]
  %v239 = vld [vmem:[%s3 + $0xa8] sm:$0xff]
  %v240 = vld [vmem:[%s3 + $0xb0] sm:$0xff]
  %v241 = vld [vmem:[%s3 + $0xb8] sm:$0xff]
  %v242 = vld [vmem:[%s3 + $0xc0] sm:$0xff]
  %v243 = vld [vmem:[%s3 + $0xc8] sm:$0xff]
  %v244 = vld [vmem:[%s3 + $0xd0] sm:$0xff]
  %v245 = vld [vmem:[%s3 + $0xd8] sm:$0xff]
  %v246 = vld [vmem:[%s3 + $0xe0] sm:$0xff]
  %v247 = vld [vmem:[%s3 + $0xe8] sm:$0xff]
  %v248 = vld [vmem:[%s3 + $0xf0] sm:$0xff]
  %v249 = vld [vmem:[%s3 + $0xf8] sm:$0xff]
  %v250 = vld [vmem:[%s3 + $0x100] sm:$0xff]
  %v251 = vld [vmem:[%s3 + $0x108] sm:$0xff]
  %v252 = vld [vmem:[%s3 + $0x110] sm:$0xff]
  %v253 = vld [vmem:[%s3 + $0x118] sm:$0xff]
  %v254 = vld [vmem:[%s3 + $0x120] sm:$0xff]
  %v255 = vld [vmem:[%s3 + $0x128] sm:$0xff]
  %v256 = vld [vmem:[%s3 + $0x130] sm:$0xff]
  %v257 = vld [vmem:[%s3 + $0x138] sm:$0xff]
  %v258 = vld [vmem:[%s3 + $0x140] sm:$0xff]
  %v259 = vld [vmem:[%s3 + $0x148] sm:$0xff]
  %v260 = vld [vmem:[%s3 + $0x150] sm:$0xff]
  %v261 = vld [vmem:[%s3 + $0x158] sm:$0xff]
  %v262 = vld [vmem:[%s3 + $0x160] sm:$0xff]
  %v263 = vld [vmem:[%s3 + $0x168] sm:$0xff]
  %v264 = vld [vmem:[%s3 + $0x170] sm:$0xff]
  %v265 = vld [vmem:[%s3 + $0x178] sm:$0xff]
  %v266 = vld [vmem:[%s3 + $0x180] sm:$0xff]
  %v267 = vld [vmem:[%s3 + $0x188] sm:$0xff]
  %v268 = vld [vmem:[%s3 + $0x190] sm:$0xff]
  %v269 = vld [vmem:[%s3 + $0x198] sm:$0xff]
  %v270 = vld [vmem:[%s3 + $0x1a0] sm:$0xff]
  %v271 = vld [vmem:[%s3 + $0x1a8] sm:$0xff]
  %v272 = vld [vmem:[%s3 + $0x1b0] sm:$0xff]
  %v273 = vld [vmem:[%s3 + $0x1b8] sm:$0xff]
  %v274 = vld [vmem:[%s3 + $0x1c0] sm:$0xff]
  %v275 = vld [vmem:[%s3 + $0x1c8] sm:$0xff]
  %v276 = vld [vmem:[%s3 + $0x1d0] sm:$0xff]
  %v277 = vld [vmem:[%s3 + $0x1d8] sm:$0xff]
  %v278 = vld [vmem:[%s3 + $0x1e0] sm:$0xff]
  %v279 = vld [vmem:[%s3 + $0x1e8] sm:$0xff]
  %v280 = vld [vmem:[%s3 + $0x1f0] sm:$0xff]
  %v281 = vld [vmem:[%s3 + $0x1f8] sm:$0xff]
  %v282 = vld [vmem:[#allocation3] sm:$0xff]
  %v283 = vld [vmem:[#allocation3 + $0x8] sm:$0xff]
  %284 = vmatpush.msra.mxu0 %v248
  %285 = vmatpush.msra.mxu0 %v246
  %286 = vmatpush.msra.mxu0 %v244
  %287 = vmatpush.msra.mxu0 %v242
  %288 = vmatpush.msra.mxu0 %v240
  %289 = vmatpush.msra.mxu0 %v238
  %290 = vmatpush.msra.mxu0 %v236
  %291 = vmatpush.msra.mxu0 %v234
  %292 = vmatpush.msra.mxu0 %v232
  %293 = vmatpush.msra.mxu0 %v230
  %294 = vmatpush.msra.mxu0 %v228
  %295 = vmatpush.msra.mxu0 %v226
  %296 = vmatpush.msra.mxu0 %v224
  %297 = vmatpush.msra.mxu0 %v222
  %298 = vmatpush.msra.mxu0 %v220
  %299 = vmatpush.msra.mxu0 %v218
  %300 = vmatmul.f32.gmra.mxu0 %v216
  %v301 = vpop.f32.mrf.mxu0
  %v302 = vadd.f32 %v282, %v301
  %303 = vdwg.mxu0
  %304 = vmatpush.msra.mxu0 %v280
  %305 = vmatpush.msra.mxu0 %v278
  %306 = vmatpush.msra.mxu0 %v276
  %307 = vmatpush.msra.mxu0 %v274
  %308 = vmatpush.msra.mxu0 %v272
  %309 = vmatpush.msra.mxu0 %v270
  %310 = vmatpush.msra.mxu0 %v268
  %311 = vmatpush.msra.mxu0 %v266
  %312 = vmatpush.msra.mxu0 %v264
  %313 = vmatpush.msra.mxu0 %v262
  %314 = vmatpush.msra.mxu0 %v260
  %315 = vmatpush.msra.mxu0 %v258
  %316 = vmatpush.msra.mxu0 %v256
  %317 = vmatpush.msra.mxu0 %v254
  %318 = vmatpush.msra.mxu0 %v252
  %319 = vmatpush.msra.mxu0 %v250
  %320 = vmatmul.f32.gmra.mxu0 %v217
  %v321 = vpop.f32.mrf.mxu0
  %v322 = vadd.f32 %v302, %v321
  %323 = vdwg.mxu0
  %324 = vmatpush.msra.mxu0 %v249
  %325 = vmatpush.msra.mxu0 %v247
  %326 = vmatpush.msra.mxu0 %v245
  %327 = vmatpush.msra.mxu0 %v243
  %328 = vmatpush.msra.mxu0 %v241
  %329 = vmatpush.msra.mxu0 %v239
  %330 = vmatpush.msra.mxu0 %v237
  %331 = vmatpush.msra.mxu0 %v235
  %332 = vmatpush.msra.mxu0 %v233
  %333 = vmatpush.msra.mxu0 %v231
  %334 = vmatpush.msra.mxu0 %v229
  %335 = vmatpush.msra.mxu0 %v227
  %336 = vmatpush.msra.mxu0 %v225
  %337 = vmatpush.msra.mxu0 %v223
  %338 = vmatpush.msra.mxu0 %v221
  %339 = vmatpush.msra.mxu0 %v219
  %340 = vmatmul.f32.gmra.mxu0 %v216
  %v341 = vpop.f32.mrf.mxu0
  %v342 = vadd.f32 %v283, %v341
  %343 = vdwg.mxu0
  %344 = vmatpush.msra.mxu0 %v281
  %345 = vmatpush.msra.mxu0 %v279
  %346 = vmatpush.msra.mxu0 %v277
  %347 = vmatpush.msra.mxu0 %v275
  %348 = vmatpush.msra.mxu0 %v273
  %349 = vmatpush.msra.mxu0 %v271
  %350 = vmatpush.msra.mxu0 %v269
  %351 = vmatpush.msra.mxu0 %v267
  %352 = vmatpush.msra.mxu0 %v265
  %353 = vmatpush.msra.mxu0 %v263
  %354 = vmatpush.msra.mxu0 %v261
  %355 = vmatpush.msra.mxu0 %v259
  %356 = vmatpush.msra.mxu0 %v257
  %357 = vmatpush.msra.mxu0 %v255
  %358 = vmatpush.msra.mxu0 %v253
  %359 = vmatpush.msra.mxu0 %v251
  %360 = vmatmul.f32.gmra.mxu0 %v217
  %v361 = vpop.f32.mrf.mxu0
  %v362 = vadd.f32 %v342, %v361
  %363 = vdwg.mxu0
  %v364 = vtanh.pop %v322
  %v365 = vtanh.pop %v362
  %366 = vst [vmem:[#allocation4] sm:$0xff] %v364
  %367 = vst [vmem:[#allocation4 + $0x8] sm:$0xff] %v365
  %v368 = vld [vmem:[%s3] sm:$0xff]
  %v369 = vld [vmem:[%s3 + $0x8] sm:$0xff]
  %v370 = vld [vmem:[%s3 + $0x10] sm:$0xff]
  %v371 = vld [vmem:[%s3 + $0x18] sm:$0xff]
  %v372 = vld [vmem:[%s3 + $0x20] sm:$0xff]
  %v373 = vld [vmem:[%s3 + $0x28] sm:$0xff]
  %v374 = vld [vmem:[%s3 + $0x30] sm:$0xff]
  %v375 = vld [vmem:[%s3 + $0x38] sm:$0xff]
  %v376 = vld [vmem:[%s3 + $0x40] sm:$0xff]
  %v377 = vld [vmem:[%s3 + $0x48] sm:$0xff]
  %v378 = vld [vmem:[%s3 + $0x50] sm:$0xff]
  %v379 = vld [vmem:[%s3 + $0x58] sm:$0xff]
  %v380 = vld [vmem:[%s3 + $0x60] sm:$0xff]
  %v381 = vld [vmem:[%s3 + $0x68] sm:$0xff]
  %v382 = vld [vmem:[%s3 + $0x70] sm:$0xff]
  %v383 = vld [vmem:[%s3 + $0x78] sm:$0xff]
  %v384 = vld [vmem:[%s3 + $0x80] sm:$0xff]
  %v385 = vld [vmem:[%s3 + $0x88] sm:$0xff]
  %v386 = vld [vmem:[%s3 + $0x90] sm:$0xff]
  %v387 = vld [vmem:[%s3 + $0x98] sm:$0xff]
  %v388 = vld [vmem:[%s3 + $0xa0] sm:$0xff]
  %v389 = vld [vmem:[%s3 + $0xa8] sm:$0xff]
  %v390 = vld [vmem:[%s3 + $0xb0] sm:$0xff]
  %v391 = vld [vmem:[%s3 + $0xb8] sm:$0xff]
  %v392 = vld [vmem:[%s3 + $0xc0] sm:$0xff]
  %v393 = vld [vmem:[%s3 + $0xc8] sm:$0xff]
  %v394 = vld [vmem:[%s3 + $0xd0] sm:$0xff]
  %v395 = vld [vmem:[%s3 + $0xd8] sm:$0xff]
  %v396 = vld [vmem:[%s3 + $0xe0] sm:$0xff]
  %v397 = vld [vmem:[%s3 + $0xe8] sm:$0xff]
  %v398 = vld [vmem:[%s3 + $0xf0] sm:$0xff]
  %v399 = vld [vmem:[%s3 + $0xf8] sm:$0xff]
  %v400 = vld [vmem:[%s3 + $0x100] sm:$0xff]
  %v401 = vld [vmem:[%s3 + $0x108] sm:$0xff]
  %v402 = vld [vmem:[%s3 + $0x110] sm:$0xff]
  %v403 = vld [vmem:[%s3 + $0x118] sm:$0xff]
  %v404 = vld [vmem:[%s3 + $0x120] sm:$0xff]
  %v405 = vld [vmem:[%s3 + $0x128] sm:$0xff]
  %v406 = vld [vmem:[%s3 + $0x130] sm:$0xff]
  %v407 = vld [vmem:[%s3 + $0x138] sm:$0xff]
  %v408 = vld [vmem:[%s3 + $0x140] sm:$0xff]
  %v409 = vld [vmem:[%s3 + $0x148] sm:$0xff]
  %v410 = vld [vmem:[%s3 + $0x150] sm:$0xff]
  %v411 = vld [vmem:[%s3 + $0x158] sm:$0xff]
  %v412 = vld [vmem:[%s3 + $0x160] sm:$0xff]
  %v413 = vld [vmem:[%s3 + $0x168] sm:$0xff]
  %v414 = vld [vmem:[%s3 + $0x170] sm:$0xff]
  %v415 = vld [vmem:[%s3 + $0x178] sm:$0xff]
  %v416 = vld [vmem:[%s3 + $0x180] sm:$0xff]
  %v417 = vld [vmem:[%s3 + $0x188] sm:$0xff]
  %v418 = vld [vmem:[%s3 + $0x190] sm:$0xff]
  %v419 = vld [vmem:[%s3 + $0x198] sm:$0xff]
  %v420 = vld [vmem:[%s3 + $0x1a0] sm:$0xff]
  %v421 = vld [vmem:[%s3 + $0x1a8] sm:$0xff]
  %v422 = vld [vmem:[%s3 + $0x1b0] sm:$0xff]
  %v423 = vld [vmem:[%s3 + $0x1b8] sm:$0xff]
  %v424 = vld [vmem:[%s3 + $0x1c0] sm:$0xff]
  %v425 = vld [vmem:[%s3 + $0x1c8] sm:$0xff]
  %v426 = vld [vmem:[%s3 + $0x1d0] sm:$0xff]
  %v427 = vld [vmem:[%s3 + $0x1d8] sm:$0xff]
  %v428 = vld [vmem:[%s3 + $0x1e0] sm:$0xff]
  %v429 = vld [vmem:[%s3 + $0x1e8] sm:$0xff]
  %v430 = vld [vmem:[%s3 + $0x1f0] sm:$0xff]
  %v431 = vld [vmem:[%s3 + $0x1f8] sm:$0xff]
  %s432 = scalar_lea.vmem [#allocation3], 16
  %v433 = vld [vmem:[%s432] sm:$0xff]
  %v434 = vld [vmem:[%s432 + $0x8] sm:$0xff]
  %435 = vmatpush.msra.mxu0 %v398
  %436 = vmatpush.msra.mxu0 %v396
  %437 = vmatpush.msra.mxu0 %v394
  %438 = vmatpush.msra.mxu0 %v392
  %439 = vmatpush.msra.mxu0 %v390
  %440 = vmatpush.msra.mxu0 %v388
  %441 = vmatpush.msra.mxu0 %v386
  %442 = vmatpush.msra.mxu0 %v384
  %443 = vmatpush.msra.mxu0 %v382
  %444 = vmatpush.msra.mxu0 %v380
  %445 = vmatpush.msra.mxu0 %v378
  %446 = vmatpush.msra.mxu0 %v376
  %447 = vmatpush.msra.mxu0 %v374
  %448 = vmatpush.msra.mxu0 %v372
  %449 = vmatpush.msra.mxu0 %v370
  %450 = vmatpush.msra.mxu0 %v368
  %451 = vmatmul.f32.gmra.mxu0 %v364
  %v452 = vpop.f32.mrf.mxu0
  %v453 = vadd.f32 %v433, %v452
  %454 = vdwg.mxu0
  %455 = vmatpush.msra.mxu0 %v430
  %456 = vmatpush.msra.mxu0 %v428
  %457 = vmatpush.msra.mxu0 %v426
  %458 = vmatpush.msra.mxu0 %v424
  %459 = vmatpush.msra.mxu0 %v422
  %460 = vmatpush.msra.mxu0 %v420
  %461 = vmatpush.msra.mxu0 %v418
  %462 = vmatpush.msra.mxu0 %v416
  %463 = vmatpush.msra.mxu0 %v414
  %464 = vmatpush.msra.mxu0 %v412
  %465 = vmatpush.msra.mxu0 %v410
  %466 = vmatpush.msra.mxu0 %v408
  %467 = vmatpush.msra.mxu0 %v406
  %468 = vmatpush.msra.mxu0 %v404
  %469 = vmatpush.msra.mxu0 %v402
  %470 = vmatpush.msra.mxu0 %v400
  %471 = vmatmul.f32.gmra.mxu0 %v365
  %v472 = vpop.f32.mrf.mxu0
  %v473 = vadd.f32 %v453, %v472
  %474 = vdwg.mxu0
  %475 = vmatpush.msra.mxu0 %v399
  %476 = vmatpush.msra.mxu0 %v397
  %477 = vmatpush.msra.mxu0 %v395
  %478 = vmatpush.msra.mxu0 %v393
  %479 = vmatpush.msra.mxu0 %v391
  %480 = vmatpush.msra.mxu0 %v389
  %481 = vmatpush.msra.mxu0 %v387
  %482 = vmatpush.msra.mxu0 %v385
  %483 = vmatpush.msra.mxu0 %v383
  %484 = vmatpush.msra.mxu0 %v381
  %485 = vmatpush.msra.mxu0 %v379
  %486 = vmatpush.msra.mxu0 %v377
  %487 = vmatpush.msra.mxu0 %v375
  %488 = vmatpush.msra.mxu0 %v373
  %489 = vmatpush.msra.mxu0 %v371
  %490 = vmatpush.msra.mxu0 %v369
  %491 = vmatmul.f32.gmra.mxu0 %v364
  %v492 = vpop.f32.mrf.mxu0
  %v493 = vadd.f32 %v434, %v492
  %494 = vdwg.mxu0
  %495 = vmatpush.msra.mxu0 %v431
  %496 = vmatpush.msra.mxu0 %v429
  %497 = vmatpush.msra.mxu0 %v427
  %498 = vmatpush.msra.mxu0 %v425
  %499 = vmatpush.msra.mxu0 %v423
  %500 = vmatpush.msra.mxu0 %v421
  %501 = vmatpush.msra.mxu0 %v419
  %502 = vmatpush.msra.mxu0 %v417
  %503 = vmatpush.msra.mxu0 %v415
  %504 = vmatpush.msra.mxu0 %v413
  %505 = vmatpush.msra.mxu0 %v411
  %506 = vmatpush.msra.mxu0 %v409
  %507 = vmatpush.msra.mxu0 %v407
  %508 = vmatpush.msra.mxu0 %v405
  %509 = vmatpush.msra.mxu0 %v403
  %510 = vmatpush.msra.mxu0 %v401
  %511 = vmatmul.f32.gmra.mxu0 %v365
  %v512 = vpop.f32.mrf.mxu0
  %v513 = vadd.f32 %v493, %v512
  %514 = vdwg.mxu0
  %v515 = vtanh.pop %v473
  %v516 = vtanh.pop %v513
  %s517 = scalar_lea.vmem [#allocation4], 16
  %518 = vst [vmem:[%s517] sm:$0xff] %v515
  %519 = vst [vmem:[%s517 + $0x8] sm:$0xff] %v516
  %v520 = vld [vmem:[%s3] sm:$0xff]
  %v521 = vld [vmem:[%s3 + $0x8] sm:$0xff]
  %v522 = vld [vmem:[%s3 + $0x10] sm:$0xff]
  %v523 = vld [vmem:[%s3 + $0x18] sm:$0xff]
  %v524 = vld [vmem:[%s3 + $0x20] sm:$0xff]
  %v525 = vld [vmem:[%s3 + $0x28] sm:$0xff]
  %v526 = vld [vmem:[%s3 + $0x30] sm:$0xff]
  %v527 = vld [vmem:[%s3 + $0x38] sm:$0xff]
  %v528 = vld [vmem:[%s3 + $0x40] sm:$0xff]
  %v529 = vld [vmem:[%s3 + $0x48] sm:$0xff]
  %v530 = vld [vmem:[%s3 + $0x50] sm:$0xff]
  %v531 = vld [vmem:[%s3 + $0x58] sm:$0xff]
  %v532 = vld [vmem:[%s3 + $0x60] sm:$0xff]
  %v533 = vld [vmem:[%s3 + $0x68] sm:$0xff]
  %v534 = vld [vmem:[%s3 + $0x70] sm:$0xff]
  %v535 = vld [vmem:[%s3 + $0x78] sm:$0xff]
  %v536 = vld [vmem:[%s3 + $0x80] sm:$0xff]
  %v537 = vld [vmem:[%s3 + $0x88] sm:$0xff]
  %v538 = vld [vmem:[%s3 + $0x90] sm:$0xff]
  %v539 = vld [vmem:[%s3 + $0x98] sm:$0xff]
  %v540 = vld [vmem:[%s3 + $0xa0] sm:$0xff]
  %v541 = vld [vmem:[%s3 + $0xa8] sm:$0xff]
  %v542 = vld [vmem:[%s3 + $0xb0] sm:$0xff]
  %v543 = vld [vmem:[%s3 + $0xb8] sm:$0xff]
  %v544 = vld [vmem:[%s3 + $0xc0] sm:$0xff]
  %v545 = vld [vmem:[%s3 + $0xc8] sm:$0xff]
  %v546 = vld [vmem:[%s3 + $0xd0] sm:$0xff]
  %v547 = vld [vmem:[%s3 + $0xd8] sm:$0xff]
  %v548 = vld [vmem:[%s3 + $0xe0] sm:$0xff]
  %v549 = vld [vmem:[%s3 + $0xe8] sm:$0xff]
  %v550 = vld [vmem:[%s3 + $0xf0] sm:$0xff]
  %v551 = vld [vmem:[%s3 + $0xf8] sm:$0xff]
  %v552 = vld [vmem:[%s3 + $0x100] sm:$0xff]
  %v553 = vld [vmem:[%s3 + $0x108] sm:$0xff]
  %v554 = vld [vmem:[%s3 + $0x110] sm:$0xff]
  %v555 = vld [vmem:[%s3 + $0x118] sm:$0xff]
  %v556 = vld [vmem:[%s3 + $0x120] sm:$0xff]
  %v557 = vld [vmem:[%s3 + $0x128] sm:$0xff]
  %v558 = vld [vmem:[%s3 + $0x130] sm:$0xff]
  %v559 = vld [vmem:[%s3 + $0x138] sm:$0xff]
  %v560 = vld [vmem:[%s3 + $0x140] sm:$0xff]
  %v561 = vld [vmem:[%s3 + $0x148] sm:$0xff]
  %v562 = vld [vmem:[%s3 + $0x150] sm:$0xff]
  %v563 = vld [vmem:[%s3 + $0x158] sm:$0xff]
  %v564 = vld [vmem:[%s3 + $0x160] sm:$0xff]
  %v565 = vld [vmem:[%s3 + $0x168] sm:$0xff]
  %v566 = vld [vmem:[%s3 + $0x170] sm:$0xff]
  %v567 = vld [vmem:[%s3 + $0x178] sm:$0xff]
  %v568 = vld [vmem:[%s3 + $0x180] sm:$0xff]
  %v569 = vld [vmem:[%s3 + $0x188] sm:$0xff]
  %v570 = vld [vmem:[%s3 + $0x190] sm:$0xff]
  %v571 = vld [vmem:[%s3 + $0x198] sm:$0xff]
  %v572 = vld [vmem:[%s3 + $0x1a0] sm:$0xff]
  %v573 = vld [vmem:[%s3 + $0x1a8] sm:$0xff]
  %v574 = vld [vmem:[%s3 + $0x1b0] sm:$0xff]
  %v575 = vld [vmem:[%s3 + $0x1b8] sm:$0xff]
  %v576 = vld [vmem:[%s3 + $0x1c0] sm:$0xff]
  %v577 = vld [vmem:[%s3 + $0x1c8] sm:$0xff]
  %v578 = vld [vmem:[%s3 + $0x1d0] sm:$0xff]
  %v579 = vld [vmem:[%s3 + $0x1d8] sm:$0xff]
  %v580 = vld [vmem:[%s3 + $0x1e0] sm:$0xff]
  %v581 = vld [vmem:[%s3 + $0x1e8] sm:$0xff]
  %v582 = vld [vmem:[%s3 + $0x1f0] sm:$0xff]
  %v583 = vld [vmem:[%s3 + $0x1f8] sm:$0xff]
  %s584 = scalar_lea.vmem [#allocation3], 32
  %v585 = vld [vmem:[%s584] sm:$0xff]
  %v586 = vld [vmem:[%s584 + $0x8] sm:$0xff]
  %587 = vmatpush.msra.mxu0 %v550
  %588 = vmatpush.msra.mxu0 %v548
  %589 = vmatpush.msra.mxu0 %v546
  %590 = vmatpush.msra.mxu0 %v544
  %591 = vmatpush.msra.mxu0 %v542
  %592 = vmatpush.msra.mxu0 %v540
  %593 = vmatpush.msra.mxu0 %v538
  %594 = vmatpush.msra.mxu0 %v536
  %595 = vmatpush.msra.mxu0 %v534
  %596 = vmatpush.msra.mxu0 %v532
  %597 = vmatpush.msra.mxu0 %v530
  %598 = vmatpush.msra.mxu0 %v528
  %599 = vmatpush.msra.mxu0 %v526
  %600 = vmatpush.msra.mxu0 %v524
  %601 = vmatpush.msra.mxu0 %v522
  %602 = vmatpush.msra.mxu0 %v520
  %603 = vmatmul.f32.gmra.mxu0 %v515
  %v604 = vpop.f32.mrf.mxu0
  %v605 = vadd.f32 %v585, %v604
  %606 = vdwg.mxu0
  %607 = vmatpush.msra.mxu0 %v582
  %608 = vmatpush.msra.mxu0 %v580
  %609 = vmatpush.msra.mxu0 %v578
  %610 = vmatpush.msra.mxu0 %v576
  %611 = vmatpush.msra.mxu0 %v574
  %612 = vmatpush.msra.mxu0 %v572
  %613 = vmatpush.msra.mxu0 %v570
  %614 = vmatpush.msra.mxu0 %v568
  %615 = vmatpush.msra.mxu0 %v566
  %616 = vmatpush.msra.mxu0 %v564
  %617 = vmatpush.msra.mxu0 %v562
  %618 = vmatpush.msra.mxu0 %v560
  %619 = vmatpush.msra.mxu0 %v558
  %620 = vmatpush.msra.mxu0 %v556
  %621 = vmatpush.msra.mxu0 %v554
  %622 = vmatpush.msra.mxu0 %v552
  %623 = vmatmul.f32.gmra.mxu0 %v516
  %v624 = vpop.f32.mrf.mxu0
  %v625 = vadd.f32 %v605, %v624
  %626 = vdwg.mxu0
  %627 = vmatpush.msra.mxu0 %v551
  %628 = vmatpush.msra.mxu0 %v549
  %629 = vmatpush.msra.mxu0 %v547
  %630 = vmatpush.msra.mxu0 %v545
  %631 = vmatpush.msra.mxu0 %v543
  %632 = vmatpush.msra.mxu0 %v541
  %633 = vmatpush.msra.mxu0 %v539
  %634 = vmatpush.msra.mxu0 %v537
  %635 = vmatpush.msra.mxu0 %v535
  %636 = vmatpush.msra.mxu0 %v533
  %637 = vmatpush.msra.mxu0 %v531
  %638 = vmatpush.msra.mxu0 %v529
  %639 = vmatpush.msra.mxu0 %v527
  %640 = vmatpush.msra.mxu0 %v525
  %641 = vmatpush.msra.mxu0 %v523
  %642 = vmatpush.msra.mxu0 %v521
  %643 = vmatmul.f32.gmra.mxu0 %v515
  %v644 = vpop.f32.mrf.mxu0
  %v645 = vadd.f32 %v586, %v644
  %646 = vdwg.mxu0
  %647 = vmatpush.msra.mxu0 %v583
  %648 = vmatpush.msra.mxu0 %v581
  %649 = vmatpush.msra.mxu0 %v579
  %650 = vmatpush.msra.mxu0 %v577
  %651 = vmatpush.msra.mxu0 %v575
  %652 = vmatpush.msra.mxu0 %v573
  %653 = vmatpush.msra.mxu0 %v571
  %654 = vmatpush.msra.mxu0 %v569
  %655 = vmatpush.msra.mxu0 %v567
  %656 = vmatpush.msra.mxu0 %v565
  %657 = vmatpush.msra.mxu0 %v563
  %658 = vmatpush.msra.mxu0 %v561
  %659 = vmatpush.msra.mxu0 %v559
  %660 = vmatpush.msra.mxu0 %v557
  %661 = vmatpush.msra.mxu0 %v555
  %662 = vmatpush.msra.mxu0 %v553
  %663 = vmatmul.f32.gmra.mxu0 %v516
  %v664 = vpop.f32.mrf.mxu0
  %v665 = vadd.f32 %v645, %v664
  %666 = vdwg.mxu0
  %v667 = vtanh.pop %v625
  %v668 = vtanh.pop %v665
  %s669 = scalar_lea.vmem [#allocation4], 32
  %670 = vst [vmem:[%s669] sm:$0xff] %v667
  %671 = vst [vmem:[%s669 + $0x8] sm:$0xff] %v668
  %v672 = vld [vmem:[%s3] sm:$0xff]
  %v673 = vld [vmem:[%s3 + $0x8] sm:$0xff]
  %v674 = vld [vmem:[%s3 + $0x10] sm:$0xff]
  %v675 = vld [vmem:[%s3 + $0x18] sm:$0xff]
  %v676 = vld [vmem:[%s3 + $0x20] sm:$0xff]
  %v677 = vld [vmem:[%s3 + $0x28] sm:$0xff]
  %v678 = vld [vmem:[%s3 + $0x30] sm:$0xff]
  %v679 = vld [vmem:[%s3 + $0x38] sm:$0xff]
  %v680 = vld [vmem:[%s3 + $0x40] sm:$0xff]
  %v681 = vld [vmem:[%s3 + $0x48] sm:$0xff]
  %v682 = vld [vmem:[%s3 + $0x50] sm:$0xff]
  %v683 = vld [vmem:[%s3 + $0x58] sm:$0xff]
  %v684 = vld [vmem:[%s3 + $0x60] sm:$0xff]
  %v685 = vld [vmem:[%s3 + $0x68] sm:$0xff]
  %v686 = vld [vmem:[%s3 + $0x70] sm:$0xff]
  %v687 = vld [vmem:[%s3 + $0x78] sm:$0xff]
  %v688 = vld [vmem:[%s3 + $0x80] sm:$0xff]
  %v689 = vld [vmem:[%s3 + $0x88] sm:$0xff]
  %v690 = vld [vmem:[%s3 + $0x90] sm:$0xff]
  %v691 = vld [vmem:[%s3 + $0x98] sm:$0xff]
  %v692 = vld [vmem:[%s3 + $0xa0] sm:$0xff]
  %v693 = vld [vmem:[%s3 + $0xa8] sm:$0xff]
  %v694 = vld [vmem:[%s3 + $0xb0] sm:$0xff]
  %v695 = vld [vmem:[%s3 + $0xb8] sm:$0xff]
  %v696 = vld [vmem:[%s3 + $0xc0] sm:$0xff]
  %v697 = vld [vmem:[%s3 + $0xc8] sm:$0xff]
  %v698 = vld [vmem:[%s3 + $0xd0] sm:$0xff]
  %v699 = vld [vmem:[%s3 + $0xd8] sm:$0xff]
  %v700 = vld [vmem:[%s3 + $0xe0] sm:$0xff]
  %v701 = vld [vmem:[%s3 + $0xe8] sm:$0xff]
  %v702 = vld [vmem:[%s3 + $0xf0] sm:$0xff]
  %v703 = vld [vmem:[%s3 + $0xf8] sm:$0xff]
  %v704 = vld [vmem:[%s3 + $0x100] sm:$0xff]
  %v705 = vld [vmem:[%s3 + $0x108] sm:$0xff]
  %v706 = vld [vmem:[%s3 + $0x110] sm:$0xff]
  %v707 = vld [vmem:[%s3 + $0x118] sm:$0xff]
  %v708 = vld [vmem:[%s3 + $0x120] sm:$0xff]
  %v709 = vld [vmem:[%s3 + $0x128] sm:$0xff]
  %v710 = vld [vmem:[%s3 + $0x130] sm:$0xff]
  %v711 = vld [vmem:[%s3 + $0x138] sm:$0xff]
  %v712 = vld [vmem:[%s3 + $0x140] sm:$0xff]
  %v713 = vld [vmem:[%s3 + $0x148] sm:$0xff]
  %v714 = vld [vmem:[%s3 + $0x150] sm:$0xff]
  %v715 = vld [vmem:[%s3 + $0x158] sm:$0xff]
  %v716 = vld [vmem:[%s3 + $0x160] sm:$0xff]
  %v717 = vld [vmem:[%s3 + $0x168] sm:$0xff]
  %v718 = vld [vmem:[%s3 + $0x170] sm:$0xff]
  %v719 = vld [vmem:[%s3 + $0x178] sm:$0xff]
  %v720 = vld [vmem:[%s3 + $0x180] sm:$0xff]
  %v721 = vld [vmem:[%s3 + $0x188] sm:$0xff]
  %v722 = vld [vmem:[%s3 + $0x190] sm:$0xff]
  %v723 = vld [vmem:[%s3 + $0x198] sm:$0xff]
  %v724 = vld [vmem:[%s3 + $0x1a0] sm:$0xff]
  %v725 = vld [vmem:[%s3 + $0x1a8] sm:$0xff]
  %v726 = vld [vmem:[%s3 + $0x1b0] sm:$0xff]
  %v727 = vld [vmem:[%s3 + $0x1b8] sm:$0xff]
  %v728 = vld [vmem:[%s3 + $0x1c0] sm:$0xff]
  %v729 = vld [vmem:[%s3 + $0x1c8] sm:$0xff]
  %v730 = vld [vmem:[%s3 + $0x1d0] sm:$0xff]
  %v731 = vld [vmem:[%s3 + $0x1d8] sm:$0xff]
  %v732 = vld [vmem:[%s3 + $0x1e0] sm:$0xff]
  %v733 = vld [vmem:[%s3 + $0x1e8] sm:$0xff]
  %v734 = vld [vmem:[%s3 + $0x1f0] sm:$0xff]
  %v735 = vld [vmem:[%s3 + $0x1f8] sm:$0xff]
  %s736 = scalar_lea.vmem [#allocation3], 48
  %v737 = vld [vmem:[%s736] sm:$0xff]
  %v738 = vld [vmem:[%s736 + $0x8] sm:$0xff]
  %739 = vmatpush.msra.mxu0 %v702
  %740 = vmatpush.msra.mxu0 %v700
  %741 = vmatpush.msra.mxu0 %v698
  %742 = vmatpush.msra.mxu0 %v696
  %743 = vmatpush.msra.mxu0 %v694
  %744 = vmatpush.msra.mxu0 %v692
  %745 = vmatpush.msra.mxu0 %v690
  %746 = vmatpush.msra.mxu0 %v688
  %747 = vmatpush.msra.mxu0 %v686
  %748 = vmatpush.msra.mxu0 %v684
  %749 = vmatpush.msra.mxu0 %v682
  %750 = vmatpush.msra.mxu0 %v680
  %751 = vmatpush.msra.mxu0 %v678
  %752 = vmatpush.msra.mxu0 %v676
  %753 = vmatpush.msra.mxu0 %v674
  %754 = vmatpush.msra.mxu0 %v672
  %755 = vmatmul.f32.gmra.mxu0 %v667
  %v756 = vpop.f32.mrf.mxu0
  %v757 = vadd.f32 %v737, %v756
  %758 = vdwg.mxu0
  %759 = vmatpush.msra.mxu0 %v734
  %760 = vmatpush.msra.mxu0 %v732
  %761 = vmatpush.msra.mxu0 %v730
  %762 = vmatpush.msra.mxu0 %v728
  %763 = vmatpush.msra.mxu0 %v726
  %764 = vmatpush.msra.mxu0 %v724
  %765 = vmatpush.msra.mxu0 %v722
  %766 = vmatpush.msra.mxu0 %v720
  %767 = vmatpush.msra.mxu0 %v718
  %768 = vmatpush.msra.mxu0 %v716
  %769 = vmatpush.msra.mxu0 %v714
  %770 = vmatpush.msra.mxu0 %v712
  %771 = vmatpush.msra.mxu0 %v710
  %772 = vmatpush.msra.mxu0 %v708
  %773 = vmatpush.msra.mxu0 %v706
  %774 = vmatpush.msra.mxu0 %v704
  %775 = vmatmul.f32.gmra.mxu0 %v668
  %v776 = vpop.f32.mrf.mxu0
  %v777 = vadd.f32 %v757, %v776
  %778 = vdwg.mxu0
  %779 = vmatpush.msra.mxu0 %v703
  %780 = vmatpush.msra.mxu0 %v701
  %781 = vmatpush.msra.mxu0 %v699
  %782 = vmatpush.msra.mxu0 %v697
  %783 = vmatpush.msra.mxu0 %v695
  %784 = vmatpush.msra.mxu0 %v693
  %785 = vmatpush.msra.mxu0 %v691
  %786 = vmatpush.msra.mxu0 %v689
  %787 = vmatpush.msra.mxu0 %v687
  %788 = vmatpush.msra.mxu0 %v685
  %789 = vmatpush.msra.mxu0 %v683
  %790 = vmatpush.msra.mxu0 %v681
  %791 = vmatpush.msra.mxu0 %v679
  %792 = vmatpush.msra.mxu0 %v677
  %793 = vmatpush.msra.mxu0 %v675
  %794 = vmatpush.msra.mxu0 %v673
  %795 = vmatmul.f32.gmra.mxu0 %v667
  %v796 = vpop.f32.mrf.mxu0
  %v797 = vadd.f32 %v738, %v796
  %798 = vdwg.mxu0
  %799 = vmatpush.msra.mxu0 %v735
  %800 = vmatpush.msra.mxu0 %v733
  %801 = vmatpush.msra.mxu0 %v731
  %802 = vmatpush.msra.mxu0 %v729
  %803 = vmatpush.msra.mxu0 %v727
  %804 = vmatpush.msra.mxu0 %v725
  %805 = vmatpush.msra.mxu0 %v723
  %806 = vmatpush.msra.mxu0 %v721
  %807 = vmatpush.msra.mxu0 %v719
  %808 = vmatpush.msra.mxu0 %v717
  %809 = vmatpush.msra.mxu0 %v715
  %810 = vmatpush.msra.mxu0 %v713
  %811 = vmatpush.msra.mxu0 %v711
  %812 = vmatpush.msra.mxu0 %v709
  %813 = vmatpush.msra.mxu0 %v707
  %814 = vmatpush.msra.mxu0 %v705
  %815 = vmatmul.f32.gmra.mxu0 %v668
  %v816 = vpop.f32.mrf.mxu0
  %v817 = vadd.f32 %v797, %v816
  %818 = vdwg.mxu0
  %v819 = vtanh.pop %v777
  %v820 = vtanh.pop %v817
  %s821 = scalar_lea.vmem [#allocation4], 48
  %822 = vst [vmem:[%s821] sm:$0xff] %v819
  %823 = vst [vmem:[%s821 + $0x8] sm:$0xff] %v820
  %v824 = vld [vmem:[%s3] sm:$0xff]
  %v825 = vld [vmem:[%s3 + $0x8] sm:$0xff]
  %v826 = vld [vmem:[%s3 + $0x10] sm:$0xff]
  %v827 = vld [vmem:[%s3 + $0x18] sm:$0xff]
  %v828 = vld [vmem:[%s3 + $0x20] sm:$0xff]
  %v829 = vld [vmem:[%s3 + $0x28] sm:$0xff]
  %v830 = vld [vmem:[%s3 + $0x30] sm:$0xff]
  %v831 = vld [vmem:[%s3 + $0x38] sm:$0xff]
  %v832 = vld [vmem:[%s3 + $0x40] sm:$0xff]
  %v833 = vld [vmem:[%s3 + $0x48] sm:$0xff]
  %v834 = vld [vmem:[%s3 + $0x50] sm:$0xff]
  %v835 = vld [vmem:[%s3 + $0x58] sm:$0xff]
  %v836 = vld [vmem:[%s3 + $0x60] sm:$0xff]
  %v837 = vld [vmem:[%s3 + $0x68] sm:$0xff]
  %v838 = vld [vmem:[%s3 + $0x70] sm:$0xff]
  %v839 = vld [vmem:[%s3 + $0x78] sm:$0xff]
  %v840 = vld [vmem:[%s3 + $0x80] sm:$0xff]
  %v841 = vld [vmem:[%s3 + $0x88] sm:$0xff]
  %v842 = vld [vmem:[%s3 + $0x90] sm:$0xff]
  %v843 = vld [vmem:[%s3 + $0x98] sm:$0xff]
  %v844 = vld [vmem:[%s3 + $0xa0] sm:$0xff]
  %v845 = vld [vmem:[%s3 + $0xa8] sm:$0xff]
  %v846 = vld [vmem:[%s3 + $0xb0] sm:$0xff]
  %v847 = vld [vmem:[%s3 + $0xb8] sm:$0xff]
  %v848 = vld [vmem:[%s3 + $0xc0] sm:$0xff]
  %v849 = vld [vmem:[%s3 + $0xc8] sm:$0xff]
  %v850 = vld [vmem:[%s3 + $0xd0] sm:$0xff]
  %v851 = vld [vmem:[%s3 + $0xd8] sm:$0xff]
  %v852 = vld [vmem:[%s3 + $0xe0] sm:$0xff]
  %v853 = vld [vmem:[%s3 + $0xe8] sm:$0xff]
  %v854 = vld [vmem:[%s3 + $0xf0] sm:$0xff]
  %v855 = vld [vmem:[%s3 + $0xf8] sm:$0xff]
  %v856 = vld [vmem:[%s3 + $0x100] sm:$0xff]
  %v857 = vld [vmem:[%s3 + $0x108] sm:$0xff]
  %v858 = vld [vmem:[%s3 + $0x110] sm:$0xff]
  %v859 = vld [vmem:[%s3 + $0x118] sm:$0xff]
  %v860 = vld [vmem:[%s3 + $0x120] sm:$0xff]
  %v861 = vld [vmem:[%s3 + $0x128] sm:$0xff]
  %v862 = vld [vmem:[%s3 + $0x130] sm:$0xff]
  %v863 = vld [vmem:[%s3 + $0x138] sm:$0xff]
  %v864 = vld [vmem:[%s3 + $0x140] sm:$0xff]
  %v865 = vld [vmem:[%s3 + $0x148] sm:$0xff]
  %v866 = vld [vmem:[%s3 + $0x150] sm:$0xff]
  %v867 = vld [vmem:[%s3 + $0x158] sm:$0xff]
  %v868 = vld [vmem:[%s3 + $0x160] sm:$0xff]
  %v869 = vld [vmem:[%s3 + $0x168] sm:$0xff]
  %v870 = vld [vmem:[%s3 + $0x170] sm:$0xff]
  %v871 = vld [vmem:[%s3 + $0x178] sm:$0xff]
  %v872 = vld [vmem:[%s3 + $0x180] sm:$0xff]
  %v873 = vld [vmem:[%s3 + $0x188] sm:$0xff]
  %v874 = vld [vmem:[%s3 + $0x190] sm:$0xff]
  %v875 = vld [vmem:[%s3 + $0x198] sm:$0xff]
  %v876 = vld [vmem:[%s3 + $0x1a0] sm:$0xff]
  %v877 = vld [vmem:[%s3 + $0x1a8] sm:$0xff]
  %v878 = vld [vmem:[%s3 + $0x1b0] sm:$0xff]
  %v879 = vld [vmem:[%s3 + $0x1b8] sm:$0xff]
  %v880 = vld [vmem:[%s3 + $0x1c0] sm:$0xff]
  %v881 = vld [vmem:[%s3 + $0x1c8] sm:$0xff]
  %v882 = vld [vmem:[%s3 + $0x1d0] sm:$0xff]
  %v883 = vld [vmem:[%s3 + $0x1d8] sm:$0xff]
  %v884 = vld [vmem:[%s3 + $0x1e0] sm:$0xff]
  %v885 = vld [vmem:[%s3 + $0x1e8] sm:$0xff]
  %v886 = vld [vmem:[%s3 + $0x1f0] sm:$0xff]
  %v887 = vld [vmem:[%s3 + $0x1f8] sm:$0xff]
  %s888 = scalar_lea.vmem [#allocation3], 64
  %v889 = vld [vmem:[%s888] sm:$0xff]
  %v890 = vld [vmem:[%s888 + $0x8] sm:$0xff]
  %891 = vmatpush.msra.mxu0 %v854
  %892 = vmatpush.msra.mxu0 %v852
  %893 = vmatpush.msra.mxu0 %v850
  %894 = vmatpush.msra.mxu0 %v848
  %895 = vmatpush.msra.mxu0 %v846
  %896 = vmatpush.msra.mxu0 %v844
  %897 = vmatpush.msra.mxu0 %v842
  %898 = vmatpush.msra.mxu0 %v840
  %899 = vmatpush.msra.mxu0 %v838
  %900 = vmatpush.msra.mxu0 %v836
  %901 = vmatpush.msra.mxu0 %v834
  %902 = vmatpush.msra.mxu0 %v832
  %903 = vmatpush.msra.mxu0 %v830
  %904 = vmatpush.msra.mxu0 %v828
  %905 = vmatpush.msra.mxu0 %v826
  %906 = vmatpush.msra.mxu0 %v824
  %907 = vmatmul.f32.gmra.mxu0 %v819
  %v908 = vpop.f32.mrf.mxu0
  %v909 = vadd.f32 %v889, %v908
  %910 = vdwg.mxu0
  %911 = vmatpush.msra.mxu0 %v886
  %912 = vmatpush.msra.mxu0 %v884
  %913 = vmatpush.msra.mxu0 %v882
  %914 = vmatpush.msra.mxu0 %v880
  %915 = vmatpush.msra.mxu0 %v878
  %916 = vmatpush.msra.mxu0 %v876
  %917 = vmatpush.msra.mxu0 %v874
  %918 = vmatpush.msra.mxu0 %v872
  %919 = vmatpush.msra.mxu0 %v870
  %920 = vmatpush.msra.mxu0 %v868
  %921 = vmatpush.msra.mxu0 %v866
  %922 = vmatpush.msra.mxu0 %v864
  %923 = vmatpush.msra.mxu0 %v862
  %924 = vmatpush.msra.mxu0 %v860
  %925 = vmatpush.msra.mxu0 %v858
  %926 = vmatpush.msra.mxu0 %v856
  %927 = vmatmul.f32.gmra.mxu0 %v820
  %v928 = vpop.f32.mrf.mxu0
  %v929 = vadd.f32 %v909, %v928
  %930 = vdwg.mxu0
  %931 = vmatpush.msra.mxu0 %v855
  %932 = vmatpush.msra.mxu0 %v853
  %933 = vmatpush.msra.mxu0 %v851
  %934 = vmatpush.msra.mxu0 %v849
  %935 = vmatpush.msra.mxu0 %v847
  %936 = vmatpush.msra.mxu0 %v845
  %937 = vmatpush.msra.mxu0 %v843
  %938 = vmatpush.msra.mxu0 %v841
  %939 = vmatpush.msra.mxu0 %v839
  %940 = vmatpush.msra.mxu0 %v837
  %941 = vmatpush.msra.mxu0 %v835
  %942 = vmatpush.msra.mxu0 %v833
  %943 = vmatpush.msra.mxu0 %v831
  %944 = vmatpush.msra.mxu0 %v829
  %945 = vmatpush.msra.mxu0 %v827
  %946 = vmatpush.msra.mxu0 %v825
  %947 = vmatmul.f32.gmra.mxu0 %v819
  %v948 = vpop.f32.mrf.mxu0
  %v949 = vadd.f32 %v890, %v948
  %950 = vdwg.mxu0
  %951 = vmatpush.msra.mxu0 %v887
  %952 = vmatpush.msra.mxu0 %v885
  %953 = vmatpush.msra.mxu0 %v883
  %954 = vmatpush.msra.mxu0 %v881
  %955 = vmatpush.msra.mxu0 %v879
  %956 = vmatpush.msra.mxu0 %v877
  %957 = vmatpush.msra.mxu0 %v875
  %958 = vmatpush.msra.mxu0 %v873
  %959 = vmatpush.msra.mxu0 %v871
  %960 = vmatpush.msra.mxu0 %v869
  %961 = vmatpush.msra.mxu0 %v867
  %962 = vmatpush.msra.mxu0 %v865
  %963 = vmatpush.msra.mxu0 %v863
  %964 = vmatpush.msra.mxu0 %v861
  %965 = vmatpush.msra.mxu0 %v859
  %966 = vmatpush.msra.mxu0 %v857
  %967 = vmatmul.f32.gmra.mxu0 %v820
  %v968 = vpop.f32.mrf.mxu0
  %v969 = vadd.f32 %v949, %v968
  %970 = vdwg.mxu0
  %v971 = vtanh.pop %v929
  %v972 = vtanh.pop %v969
  %s973 = scalar_lea.vmem [#allocation4], 64
  %974 = vst [vmem:[%s973] sm:$0xff] %v971
  %975 = vst [vmem:[%s973 + $0x8] sm:$0xff] %v972
  %v976 = vld [vmem:[%s3] sm:$0xff]
  %v977 = vld [vmem:[%s3 + $0x8] sm:$0xff]
  %v978 = vld [vmem:[%s3 + $0x10] sm:$0xff]
  %v979 = vld [vmem:[%s3 + $0x18] sm:$0xff]
  %v980 = vld [vmem:[%s3 + $0x20] sm:$0xff]
  %v981 = vld [vmem:[%s3 + $0x28] sm:$0xff]
  %v982 = vld [vmem:[%s3 + $0x30] sm:$0xff]
  %v983 = vld [vmem:[%s3 + $0x38] sm:$0xff]
  %v984 = vld [vmem:[%s3 + $0x40] sm:$0xff]
  %v985 = vld [vmem:[%s3 + $0x48] sm:$0xff]
  %v986 = vld [vmem:[%s3 + $0x50] sm:$0xff]
  %v987 = vld [vmem:[%s3 + $0x58] sm:$0xff]
  %v988 = vld [vmem:[%s3 + $0x60] sm:$0xff]
  %v989 = vld [vmem:[%s3 + $0x68] sm:$0xff]
  %v990 = vld [vmem:[%s3 + $0x70] sm:$0xff]
  %v991 = vld [vmem:[%s3 + $0x78] sm:$0xff]
  %v992 = vld [vmem:[%s3 + $0x80] sm:$0xff]
  %v993 = vld [vmem:[%s3 + $0x88] sm:$0xff]
  %v994 = vld [vmem:[%s3 + $0x90] sm:$0xff]
  %v995 = vld [vmem:[%s3 + $0x98] sm:$0xff]
  %v996 = vld [vmem:[%s3 + $0xa0] sm:$0xff]
  %v997 = vld [vmem:[%s3 + $0xa8] sm:$0xff]
  %v998 = vld [vmem:[%s3 + $0xb0] sm:$0xff]
  %v999 = vld [vmem:[%s3 + $0xb8] sm:$0xff]
  %v1000 = vld [vmem:[%s3 + $0xc0] sm:$0xff]
  %v1001 = vld [vmem:[%s3 + $0xc8] sm:$0xff]
  %v1002 = vld [vmem:[%s3 + $0xd0] sm:$0xff]
  %v1003 = vld [vmem:[%s3 + $0xd8] sm:$0xff]
  %v1004 = vld [vmem:[%s3 + $0xe0] sm:$0xff]
  %v1005 = vld [vmem:[%s3 + $0xe8] sm:$0xff]
  %v1006 = vld [vmem:[%s3 + $0xf0] sm:$0xff]
  %v1007 = vld [vmem:[%s3 + $0xf8] sm:$0xff]
  %v1008 = vld [vmem:[%s3 + $0x100] sm:$0xff]
  %v1009 = vld [vmem:[%s3 + $0x108] sm:$0xff]
  %v1010 = vld [vmem:[%s3 + $0x110] sm:$0xff]
  %v1011 = vld [vmem:[%s3 + $0x118] sm:$0xff]
  %v1012 = vld [vmem:[%s3 + $0x120] sm:$0xff]
  %v1013 = vld [vmem:[%s3 + $0x128] sm:$0xff]
  %v1014 = vld [vmem:[%s3 + $0x130] sm:$0xff]
  %v1015 = vld [vmem:[%s3 + $0x138] sm:$0xff]
  %v1016 = vld [vmem:[%s3 + $0x140] sm:$0xff]
  %v1017 = vld [vmem:[%s3 + $0x148] sm:$0xff]
  %v1018 = vld [vmem:[%s3 + $0x150] sm:$0xff]
  %v1019 = vld [vmem:[%s3 + $0x158] sm:$0xff]
  %v1020 = vld [vmem:[%s3 + $0x160] sm:$0xff]
  %v1021 = vld [vmem:[%s3 + $0x168] sm:$0xff]
  %v1022 = vld [vmem:[%s3 + $0x170] sm:$0xff]
  %v1023 = vld [vmem:[%s3 + $0x178] sm:$0xff]
  %v1024 = vld [vmem:[%s3 + $0x180] sm:$0xff]
  %v1025 = vld [vmem:[%s3 + $0x188] sm:$0xff]
  %v1026 = vld [vmem:[%s3 + $0x190] sm:$0xff]
  %v1027 = vld [vmem:[%s3 + $0x198] sm:$0xff]
  %v1028 = vld [vmem:[%s3 + $0x1a0] sm:$0xff]
  %v1029 = vld [vmem:[%s3 + $0x1a8] sm:$0xff]
  %v1030 = vld [vmem:[%s3 + $0x1b0] sm:$0xff]
  %v1031 = vld [vmem:[%s3 + $0x1b8] sm:$0xff]
  %v1032 = vld [vmem:[%s3 + $0x1c0] sm:$0xff]
  %v1033 = vld [vmem:[%s3 + $0x1c8] sm:$0xff]
  %v1034 = vld [vmem:[%s3 + $0x1d0] sm:$0xff]
  %v1035 = vld [vmem:[%s3 + $0x1d8] sm:$0xff]
  %v1036 = vld [vmem:[%s3 + $0x1e0] sm:$0xff]
  %v1037 = vld [vmem:[%s3 + $0x1e8] sm:$0xff]
  %v1038 = vld [vmem:[%s3 + $0x1f0] sm:$0xff]
  %v1039 = vld [vmem:[%s3 + $0x1f8] sm:$0xff]
  %s1040 = scalar_lea.vmem [#allocation3], 80
  %v1041 = vld [vmem:[%s1040] sm:$0xff]
  %v1042 = vld [vmem:[%s1040 + $0x8] sm:$0xff]
  %1043 = vmatpush.msra.mxu0 %v1006
  %1044 = vmatpush.msra.mxu0 %v1004
  %1045 = vmatpush.msra.mxu0 %v1002
  %1046 = vmatpush.msra.mxu0 %v1000
  %1047 = vmatpush.msra.mxu0 %v998
  %1048 = vmatpush.msra.mxu0 %v996
  %1049 = vmatpush.msra.mxu0 %v994
  %1050 = vmatpush.msra.mxu0 %v992
  %1051 = vmatpush.msra.mxu0 %v990
  %1052 = vmatpush.msra.mxu0 %v988
  %1053 = vmatpush.msra.mxu0 %v986
  %1054 = vmatpush.msra.mxu0 %v984
  %1055 = vmatpush.msra.mxu0 %v982
  %1056 = vmatpush.msra.mxu0 %v980
  %1057 = vmatpush.msra.mxu0 %v978
  %1058 = vmatpush.msra.mxu0 %v976
  %1059 = vmatmul.f32.gmra.mxu0 %v971
  %v1060 = vpop.f32.mrf.mxu0
  %v1061 = vadd.f32 %v1041, %v1060
  %1062 = vdwg.mxu0
  %1063 = vmatpush.msra.mxu0 %v1038
  %1064 = vmatpush.msra.mxu0 %v1036
  %1065 = vmatpush.msra.mxu0 %v1034
  %1066 = vmatpush.msra.mxu0 %v1032
  %1067 = vmatpush.msra.mxu0 %v1030
  %1068 = vmatpush.msra.mxu0 %v1028
  %1069 = vmatpush.msra.mxu0 %v1026
  %1070 = vmatpush.msra.mxu0 %v1024
  %1071 = vmatpush.msra.mxu0 %v1022
  %1072 = vmatpush.msra.mxu0 %v1020
  %1073 = vmatpush.msra.mxu0 %v1018
  %1074 = vmatpush.msra.mxu0 %v1016
  %1075 = vmatpush.msra.mxu0 %v1014
  %1076 = vmatpush.msra.mxu0 %v1012
  %1077 = vmatpush.msra.mxu0 %v1010
  %1078 = vmatpush.msra.mxu0 %v1008
  %1079 = vmatmul.f32.gmra.mxu0 %v972
  %v1080 = vpop.f32.mrf.mxu0
  %v1081 = vadd.f32 %v1061, %v1080
  %1082 = vdwg.mxu0
  %1083 = vmatpush.msra.mxu0 %v1007
  %1084 = vmatpush.msra.mxu0 %v1005
  %1085 = vmatpush.msra.mxu0 %v1003
  %1086 = vmatpush.msra.mxu0 %v1001
  %1087 = vmatpush.msra.mxu0 %v999
  %1088 = vmatpush.msra.mxu0 %v997
  %1089 = vmatpush.msra.mxu0 %v995
  %1090 = vmatpush.msra.mxu0 %v993
  %1091 = vmatpush.msra.mxu0 %v991
  %1092 = vmatpush.msra.mxu0 %v989
  %1093 = vmatpush.msra.mxu0 %v987
  %1094 = vmatpush.msra.mxu0 %v985
  %1095 = vmatpush.msra.mxu0 %v983
  %1096 = vmatpush.msra.mxu0 %v981
  %1097 = vmatpush.msra.mxu0 %v979
  %1098 = vmatpush.msra.mxu0 %v977
  %1099 = vmatmul.f32.gmra.mxu0 %v971
  %v1100 = vpop.f32.mrf.mxu0
  %v1101 = vadd.f32 %v1042, %v1100
  %1102 = vdwg.mxu0
  %1103 = vmatpush.msra.mxu0 %v1039
  %1104 = vmatpush.msra.mxu0 %v1037
  %1105 = vmatpush.msra.mxu0 %v1035
  %1106 = vmatpush.msra.mxu0 %v1033
  %1107 = vmatpush.msra.mxu0 %v1031
  %1108 = vmatpush.msra.mxu0 %v1029
  %1109 = vmatpush.msra.mxu0 %v1027
  %1110 = vmatpush.msra.mxu0 %v1025
  %1111 = vmatpush.msra.mxu0 %v1023
  %1112 = vmatpush.msra.mxu0 %v1021
  %1113 = vmatpush.msra.mxu0 %v1019
  %1114 = vmatpush.msra.mxu0 %v1017
  %1115 = vmatpush.msra.mxu0 %v1015
  %1116 = vmatpush.msra.mxu0 %v1013
  %1117 = vmatpush.msra.mxu0 %v1011
  %1118 = vmatpush.msra.mxu0 %v1009
  %1119 = vmatmul.f32.gmra.mxu0 %v972
  %v1120 = vpop.f32.mrf.mxu0
  %v1121 = vadd.f32 %v1101, %v1120
  %1122 = vdwg.mxu0
  %v1123 = vtanh.pop %v1081
  %v1124 = vtanh.pop %v1121
  %s1125 = scalar_lea.vmem [#allocation4], 80
  %1126 = vst [vmem:[%s1125] sm:$0xff] %v1123
  %1127 = vst [vmem:[%s1125 + $0x8] sm:$0xff] %v1124
  %v1128 = vld [vmem:[%s3] sm:$0xff]
  %v1129 = vld [vmem:[%s3 + $0x8] sm:$0xff]
  %v1130 = vld [vmem:[%s3 + $0x10] sm:$0xff]
  %v1131 = vld [vmem:[%s3 + $0x18] sm:$0xff]
  %v1132 = vld [vmem:[%s3 + $0x20] sm:$0xff]
  %v1133 = vld [vmem:[%s3 + $0x28] sm:$0xff]
  %v1134 = vld [vmem:[%s3 + $0x30] sm:$0xff]
  %v1135 = vld [vmem:[%s3 + $0x38] sm:$0xff]
  %v1136 = vld [vmem:[%s3 + $0x40] sm:$0xff]
  %v1137 = vld [vmem:[%s3 + $0x48] sm:$0xff]
  %v1138 = vld [vmem:[%s3 + $0x50] sm:$0xff]
  %v1139 = vld [vmem:[%s3 + $0x58] sm:$0xff]
  %v1140 = vld [vmem:[%s3 + $0x60] sm:$0xff]
  %v1141 = vld [vmem:[%s3 + $0x68] sm:$0xff]
  %v1142 = vld [vmem:[%s3 + $0x70] sm:$0xff]
  %v1143 = vld [vmem:[%s3 + $0x78] sm:$0xff]
  %v1144 = vld [vmem:[%s3 + $0x80] sm:$0xff]
  %v1145 = vld [vmem:[%s3 + $0x88] sm:$0xff]
  %v1146 = vld [vmem:[%s3 + $0x90] sm:$0xff]
  %v1147 = vld [vmem:[%s3 + $0x98] sm:$0xff]
  %v1148 = vld [vmem:[%s3 + $0xa0] sm:$0xff]
  %v1149 = vld [vmem:[%s3 + $0xa8] sm:$0xff]
  %v1150 = vld [vmem:[%s3 + $0xb0] sm:$0xff]
  %v1151 = vld [vmem:[%s3 + $0xb8] sm:$0xff]
  %v1152 = vld [vmem:[%s3 + $0xc0] sm:$0xff]
  %v1153 = vld [vmem:[%s3 + $0xc8] sm:$0xff]
  %v1154 = vld [vmem:[%s3 + $0xd0] sm:$0xff]
  %v1155 = vld [vmem:[%s3 + $0xd8] sm:$0xff]
  %v1156 = vld [vmem:[%s3 + $0xe0] sm:$0xff]
  %v1157 = vld [vmem:[%s3 + $0xe8] sm:$0xff]
  %v1158 = vld [vmem:[%s3 + $0xf0] sm:$0xff]
  %v1159 = vld [vmem:[%s3 + $0xf8] sm:$0xff]
  %v1160 = vld [vmem:[%s3 + $0x100] sm:$0xff]
  %v1161 = vld [vmem:[%s3 + $0x108] sm:$0xff]
  %v1162 = vld [vmem:[%s3 + $0x110] sm:$0xff]
  %v1163 = vld [vmem:[%s3 + $0x118] sm:$0xff]
  %v1164 = vld [vmem:[%s3 + $0x120] sm:$0xff]
  %v1165 = vld [vmem:[%s3 + $0x128] sm:$0xff]
  %v1166 = vld [vmem:[%s3 + $0x130] sm:$0xff]
  %v1167 = vld [vmem:[%s3 + $0x138] sm:$0xff]
  %v1168 = vld [vmem:[%s3 + $0x140] sm:$0xff]
  %v1169 = vld [vmem:[%s3 + $0x148] sm:$0xff]
  %v1170 = vld [vmem:[%s3 + $0x150] sm:$0xff]
  %v1171 = vld [vmem:[%s3 + $0x158] sm:$0xff]
  %v1172 = vld [vmem:[%s3 + $0x160] sm:$0xff]
  %v1173 = vld [vmem:[%s3 + $0x168] sm:$0xff]
  %v1174 = vld [vmem:[%s3 + $0x170] sm:$0xff]
  %v1175 = vld [vmem:[%s3 + $0x178] sm:$0xff]
  %v1176 = vld [vmem:[%s3 + $0x180] sm:$0xff]
  %v1177 = vld [vmem:[%s3 + $0x188] sm:$0xff]
  %v1178 = vld [vmem:[%s3 + $0x190] sm:$0xff]
  %v1179 = vld [vmem:[%s3 + $0x198] sm:$0xff]
  %v1180 = vld [vmem:[%s3 + $0x1a0] sm:$0xff]
  %v1181 = vld [vmem:[%s3 + $0x1a8] sm:$0xff]
  %v1182 = vld [vmem:[%s3 + $0x1b0] sm:$0xff]
  %v1183 = vld [vmem:[%s3 + $0x1b8] sm:$0xff]
  %v1184 = vld [vmem:[%s3 + $0x1c0] sm:$0xff]
  %v1185 = vld [vmem:[%s3 + $0x1c8] sm:$0xff]
  %v1186 = vld [vmem:[%s3 + $0x1d0] sm:$0xff]
  %v1187 = vld [vmem:[%s3 + $0x1d8] sm:$0xff]
  %v1188 = vld [vmem:[%s3 + $0x1e0] sm:$0xff]
  %v1189 = vld [vmem:[%s3 + $0x1e8] sm:$0xff]
  %v1190 = vld [vmem:[%s3 + $0x1f0] sm:$0xff]
  %v1191 = vld [vmem:[%s3 + $0x1f8] sm:$0xff]
  %s1192 = scalar_lea.vmem [#allocation3], 96
  %v1193 = vld [vmem:[%s1192] sm:$0xff]
  %v1194 = vld [vmem:[%s1192 + $0x8] sm:$0xff]
  %1195 = vmatpush.msra.mxu0 %v1158
  %1196 = vmatpush.msra.mxu0 %v1156
  %1197 = vmatpush.msra.mxu0 %v1154
  %1198 = vmatpush.msra.mxu0 %v1152
  %1199 = vmatpush.msra.mxu0 %v1150
  %1200 = vmatpush.msra.mxu0 %v1148
  %1201 = vmatpush.msra.mxu0 %v1146
  %1202 = vmatpush.msra.mxu0 %v1144
  %1203 = vmatpush.msra.mxu0 %v1142
  %1204 = vmatpush.msra.mxu0 %v1140
  %1205 = vmatpush.msra.mxu0 %v1138
  %1206 = vmatpush.msra.mxu0 %v1136
  %1207 = vmatpush.msra.mxu0 %v1134
  %1208 = vmatpush.msra.mxu0 %v1132
  %1209 = vmatpush.msra.mxu0 %v1130
  %1210 = vmatpush.msra.mxu0 %v1128
  %1211 = vmatmul.f32.gmra.mxu0 %v1123
  %v1212 = vpop.f32.mrf.mxu0
  %v1213 = vadd.f32 %v1193, %v1212
  %1214 = vdwg.mxu0
  %1215 = vmatpush.msra.mxu0 %v1190
  %1216 = vmatpush.msra.mxu0 %v1188
  %1217 = vmatpush.msra.mxu0 %v1186
  %1218 = vmatpush.msra.mxu0 %v1184
  %1219 = vmatpush.msra.mxu0 %v1182
  %1220 = vmatpush.msra.mxu0 %v1180
  %1221 = vmatpush.msra.mxu0 %v1178
  %1222 = vmatpush.msra.mxu0 %v1176
  %1223 = vmatpush.msra.mxu0 %v1174
  %1224 = vmatpush.msra.mxu0 %v1172
  %1225 = vmatpush.msra.mxu0 %v1170
  %1226 = vmatpush.msra.mxu0 %v1168
  %1227 = vmatpush.msra.mxu0 %v1166
  %1228 = vmatpush.msra.mxu0 %v1164
  %1229 = vmatpush.msra.mxu0 %v1162
  %1230 = vmatpush.msra.mxu0 %v1160
  %1231 = vmatmul.f32.gmra.mxu0 %v1124
  %v1232 = vpop.f32.mrf.mxu0
  %v1233 = vadd.f32 %v1213, %v1232
  %1234 = vdwg.mxu0
  %1235 = vmatpush.msra.mxu0 %v1159
  %1236 = vmatpush.msra.mxu0 %v1157
  %1237 = vmatpush.msra.mxu0 %v1155
  %1238 = vmatpush.msra.mxu0 %v1153
  %1239 = vmatpush.msra.mxu0 %v1151
  %1240 = vmatpush.msra.mxu0 %v1149
  %1241 = vmatpush.msra.mxu0 %v1147
  %1242 = vmatpush.msra.mxu0 %v1145
  %1243 = vmatpush.msra.mxu0 %v1143
  %1244 = vmatpush.msra.mxu0 %v1141
  %1245 = vmatpush.msra.mxu0 %v1139
  %1246 = vmatpush.msra.mxu0 %v1137
  %1247 = vmatpush.msra.mxu0 %v1135
  %1248 = vmatpush.msra.mxu0 %v1133
  %1249 = vmatpush.msra.mxu0 %v1131
  %1250 = vmatpush.msra.mxu0 %v1129
  %1251 = vmatmul.f32.gmra.mxu0 %v1123
  %v1252 = vpop.f32.mrf.mxu0
  %v1253 = vadd.f32 %v1194, %v1252
  %1254 = vdwg.mxu0
  %1255 = vmatpush.msra.mxu0 %v1191
  %1256 = vmatpush.msra.mxu0 %v1189
  %1257 = vmatpush.msra.mxu0 %v1187
  %1258 = vmatpush.msra.mxu0 %v1185
  %1259 = vmatpush.msra.mxu0 %v1183
  %1260 = vmatpush.msra.mxu0 %v1181
  %1261 = vmatpush.msra.mxu0 %v1179
  %1262 = vmatpush.msra.mxu0 %v1177
  %1263 = vmatpush.msra.mxu0 %v1175
  %1264 = vmatpush.msra.mxu0 %v1173
  %1265 = vmatpush.msra.mxu0 %v1171
  %1266 = vmatpush.msra.mxu0 %v1169
  %1267 = vmatpush.msra.mxu0 %v1167
  %1268 = vmatpush.msra.mxu0 %v1165
  %1269 = vmatpush.msra.mxu0 %v1163
  %1270 = vmatpush.msra.mxu0 %v1161
  %1271 = vmatmul.f32.gmra.mxu0 %v1124
  %v1272 = vpop.f32.mrf.mxu0
  %v1273 = vadd.f32 %v1253, %v1272
  %1274 = vdwg.mxu0
  %v1275 = vtanh.pop %v1233
  %v1276 = vtanh.pop %v1273
  %s1277 = scalar_lea.vmem [#allocation4], 96
  %1278 = vst [vmem:[%s1277] sm:$0xff] %v1275
  %1279 = vst [vmem:[%s1277 + $0x8] sm:$0xff] %v1276
  %v1280 = vld [vmem:[%s3] sm:$0xff]
  %v1281 = vld [vmem:[%s3 + $0x8] sm:$0xff]
  %v1282 = vld [vmem:[%s3 + $0x10] sm:$0xff]
  %v1283 = vld [vmem:[%s3 + $0x18] sm:$0xff]
  %v1284 = vld [vmem:[%s3 + $0x20] sm:$0xff]
  %v1285 = vld [vmem:[%s3 + $0x28] sm:$0xff]
  %v1286 = vld [vmem:[%s3 + $0x30] sm:$0xff]
  %v1287 = vld [vmem:[%s3 + $0x38] sm:$0xff]
  %v1288 = vld [vmem:[%s3 + $0x40] sm:$0xff]
  %v1289 = vld [vmem:[%s3 + $0x48] sm:$0xff]
  %v1290 = vld [vmem:[%s3 + $0x50] sm:$0xff]
  %v1291 = vld [vmem:[%s3 + $0x58] sm:$0xff]
  %v1292 = vld [vmem:[%s3 + $0x60] sm:$0xff]
  %v1293 = vld [vmem:[%s3 + $0x68] sm:$0xff]
  %v1294 = vld [vmem:[%s3 + $0x70] sm:$0xff]
  %v1295 = vld [vmem:[%s3 + $0x78] sm:$0xff]
  %v1296 = vld [vmem:[%s3 + $0x80] sm:$0xff]
  %v1297 = vld [vmem:[%s3 + $0x88] sm:$0xff]
  %v1298 = vld [vmem:[%s3 + $0x90] sm:$0xff]
  %v1299 = vld [vmem:[%s3 + $0x98] sm:$0xff]
  %v1300 = vld [vmem:[%s3 + $0xa0] sm:$0xff]
  %v1301 = vld [vmem:[%s3 + $0xa8] sm:$0xff]
  %v1302 = vld [vmem:[%s3 + $0xb0] sm:$0xff]
  %v1303 = vld [vmem:[%s3 + $0xb8] sm:$0xff]
  %v1304 = vld [vmem:[%s3 + $0xc0] sm:$0xff]
  %v1305 = vld [vmem:[%s3 + $0xc8] sm:$0xff]
  %v1306 = vld [vmem:[%s3 + $0xd0] sm:$0xff]
  %v1307 = vld [vmem:[%s3 + $0xd8] sm:$0xff]
  %v1308 = vld [vmem:[%s3 + $0xe0] sm:$0xff]
  %v1309 = vld [vmem:[%s3 + $0xe8] sm:$0xff]
  %v1310 = vld [vmem:[%s3 + $0xf0] sm:$0xff]
  %v1311 = vld [vmem:[%s3 + $0xf8] sm:$0xff]
  %v1312 = vld [vmem:[%s3 + $0x100] sm:$0xff]
  %v1313 = vld [vmem:[%s3 + $0x108] sm:$0xff]
  %v1314 = vld [vmem:[%s3 + $0x110] sm:$0xff]
  %v1315 = vld [vmem:[%s3 + $0x118] sm:$0xff]
  %v1316 = vld [vmem:[%s3 + $0x120] sm:$0xff]
  %v1317 = vld [vmem:[%s3 + $0x128] sm:$0xff]
  %v1318 = vld [vmem:[%s3 + $0x130] sm:$0xff]
  %v1319 = vld [vmem:[%s3 + $0x138] sm:$0xff]
  %v1320 = vld [vmem:[%s3 + $0x140] sm:$0xff]
  %v1321 = vld [vmem:[%s3 + $0x148] sm:$0xff]
  %v1322 = vld [vmem:[%s3 + $0x150] sm:$0xff]
  %v1323 = vld [vmem:[%s3 + $0x158] sm:$0xff]
  %v1324 = vld [vmem:[%s3 + $0x160] sm:$0xff]
  %v1325 = vld [vmem:[%s3 + $0x168] sm:$0xff]
  %v1326 = vld [vmem:[%s3 + $0x170] sm:$0xff]
  %v1327 = vld [vmem:[%s3 + $0x178] sm:$0xff]
  %v1328 = vld [vmem:[%s3 + $0x180] sm:$0xff]
  %v1329 = vld [vmem:[%s3 + $0x188] sm:$0xff]
  %v1330 = vld [vmem:[%s3 + $0x190] sm:$0xff]
  %v1331 = vld [vmem:[%s3 + $0x198] sm:$0xff]
  %v1332 = vld [vmem:[%s3 + $0x1a0] sm:$0xff]
  %v1333 = vld [vmem:[%s3 + $0x1a8] sm:$0xff]
  %v1334 = vld [vmem:[%s3 + $0x1b0] sm:$0xff]
  %v1335 = vld [vmem:[%s3 + $0x1b8] sm:$0xff]
  %v1336 = vld [vmem:[%s3 + $0x1c0] sm:$0xff]
  %v1337 = vld [vmem:[%s3 + $0x1c8] sm:$0xff]
  %v1338 = vld [vmem:[%s3 + $0x1d0] sm:$0xff]
  %v1339 = vld [vmem:[%s3 + $0x1d8] sm:$0xff]
  %v1340 = vld [vmem:[%s3 + $0x1e0] sm:$0xff]
  %v1341 = vld [vmem:[%s3 + $0x1e8] sm:$0xff]
  %v1342 = vld [vmem:[%s3 + $0x1f0] sm:$0xff]
  %v1343 = vld [vmem:[%s3 + $0x1f8] sm:$0xff]
  %s1344 = scalar_lea.vmem [#allocation3], 112
  %v1345 = vld [vmem:[%s1344] sm:$0xff]
  %v1346 = vld [vmem:[%s1344 + $0x8] sm:$0xff]
  %1347 = vmatpush.msra.mxu0 %v1310
  %1348 = vmatpush.msra.mxu0 %v1308
  %1349 = vmatpush.msra.mxu0 %v1306
  %1350 = vmatpush.msra.mxu0 %v1304
  %1351 = vmatpush.msra.mxu0 %v1302
  %1352 = vmatpush.msra.mxu0 %v1300
  %1353 = vmatpush.msra.mxu0 %v1298
  %1354 = vmatpush.msra.mxu0 %v1296
  %1355 = vmatpush.msra.mxu0 %v1294
  %1356 = vmatpush.msra.mxu0 %v1292
  %1357 = vmatpush.msra.mxu0 %v1290
  %1358 = vmatpush.msra.mxu0 %v1288
  %1359 = vmatpush.msra.mxu0 %v1286
  %1360 = vmatpush.msra.mxu0 %v1284
  %1361 = vmatpush.msra.mxu0 %v1282
  %1362 = vmatpush.msra.mxu0 %v1280
  %1363 = vmatmul.f32.gmra.mxu0 %v1275
  %v1364 = vpop.f32.mrf.mxu0
  %v1365 = vadd.f32 %v1345, %v1364
  %1366 = vdwg.mxu0
  %1367 = vmatpush.msra.mxu0 %v1342
  %1368 = vmatpush.msra.mxu0 %v1340
  %1369 = vmatpush.msra.mxu0 %v1338
  %1370 = vmatpush.msra.mxu0 %v1336
  %1371 = vmatpush.msra.mxu0 %v1334
  %1372 = vmatpush.msra.mxu0 %v1332
  %1373 = vmatpush.msra.mxu0 %v1330
  %1374 = vmatpush.msra.mxu0 %v1328
  %1375 = vmatpush.msra.mxu0 %v1326
  %1376 = vmatpush.msra.mxu0 %v1324
  %1377 = vmatpush.msra.mxu0 %v1322
  %1378 = vmatpush.msra.mxu0 %v1320
  %1379 = vmatpush.msra.mxu0 %v1318
  %1380 = vmatpush.msra.mxu0 %v1316
  %1381 = vmatpush.msra.mxu0 %v1314
  %1382 = vmatpush.msra.mxu0 %v1312
  %1383 = vmatmul.f32.gmra.mxu0 %v1276
  %v1384 = vpop.f32.mrf.mxu0
  %v1385 = vadd.f32 %v1365, %v1384
  %1386 = vdwg.mxu0
  %1387 = vmatpush.msra.mxu0 %v1311
  %1388 = vmatpush.msra.mxu0 %v1309
  %1389 = vmatpush.msra.mxu0 %v1307
  %1390 = vmatpush.msra.mxu0 %v1305
  %1391 = vmatpush.msra.mxu0 %v1303
  %1392 = vmatpush.msra.mxu0 %v1301
  %1393 = vmatpush.msra.mxu0 %v1299
  %1394 = vmatpush.msra.mxu0 %v1297
  %1395 = vmatpush.msra.mxu0 %v1295
  %1396 = vmatpush.msra.mxu0 %v1293
  %1397 = vmatpush.msra.mxu0 %v1291
  %1398 = vmatpush.msra.mxu0 %v1289
  %1399 = vmatpush.msra.mxu0 %v1287
  %1400 = vmatpush.msra.mxu0 %v1285
  %1401 = vmatpush.msra.mxu0 %v1283
  %1402 = vmatpush.msra.mxu0 %v1281
  %1403 = vmatmul.f32.gmra.mxu0 %v1275
  %v1404 = vpop.f32.mrf.mxu0
  %v1405 = vadd.f32 %v1346, %v1404
  %1406 = vdwg.mxu0
  %1407 = vmatpush.msra.mxu0 %v1343
  %1408 = vmatpush.msra.mxu0 %v1341
  %1409 = vmatpush.msra.mxu0 %v1339
  %1410 = vmatpush.msra.mxu0 %v1337
  %1411 = vmatpush.msra.mxu0 %v1335
  %1412 = vmatpush.msra.mxu0 %v1333
  %1413 = vmatpush.msra.mxu0 %v1331
  %1414 = vmatpush.msra.mxu0 %v1329
  %1415 = vmatpush.msra.mxu0 %v1327
  %1416 = vmatpush.msra.mxu0 %v1325
  %1417 = vmatpush.msra.mxu0 %v1323
  %1418 = vmatpush.msra.mxu0 %v1321
  %1419 = vmatpush.msra.mxu0 %v1319
  %1420 = vmatpush.msra.mxu0 %v1317
  %1421 = vmatpush.msra.mxu0 %v1315
  %1422 = vmatpush.msra.mxu0 %v1313
  %1423 = vmatmul.f32.gmra.mxu0 %v1276
  %v1424 = vpop.f32.mrf.mxu0
  %v1425 = vadd.f32 %v1405, %v1424
  %1426 = vdwg.mxu0
  %v1427 = vtanh.pop %v1385
  %v1428 = vtanh.pop %v1425
  %s1429 = scalar_lea.vmem [#allocation4], 112
  %1430 = vst [vmem:[%s1429] sm:$0xff] %v1427
  %1431 = vst [vmem:[%s1429 + $0x8] sm:$0xff] %v1428
  %v1432 = vld [vmem:[%s3] sm:$0xff]
  %v1433 = vld [vmem:[%s3 + $0x8] sm:$0xff]
  %v1434 = vld [vmem:[%s3 + $0x10] sm:$0xff]
  %v1435 = vld [vmem:[%s3 + $0x18] sm:$0xff]
  %v1436 = vld [vmem:[%s3 + $0x20] sm:$0xff]
  %v1437 = vld [vmem:[%s3 + $0x28] sm:$0xff]
  %v1438 = vld [vmem:[%s3 + $0x30] sm:$0xff]
  %v1439 = vld [vmem:[%s3 + $0x38] sm:$0xff]
  %v1440 = vld [vmem:[%s3 + $0x40] sm:$0xff]
  %v1441 = vld [vmem:[%s3 + $0x48] sm:$0xff]
  %v1442 = vld [vmem:[%s3 + $0x50] sm:$0xff]
  %v1443 = vld [vmem:[%s3 + $0x58] sm:$0xff]
  %v1444 = vld [vmem:[%s3 + $0x60] sm:$0xff]
  %v1445 = vld [vmem:[%s3 + $0x68] sm:$0xff]
  %v1446 = vld [vmem:[%s3 + $0x70] sm:$0xff]
  %v1447 = vld [vmem:[%s3 + $0x78] sm:$0xff]
  %v1448 = vld [vmem:[%s3 + $0x80] sm:$0xff]
  %v1449 = vld [vmem:[%s3 + $0x88] sm:$0xff]
  %v1450 = vld [vmem:[%s3 + $0x90] sm:$0xff]
  %v1451 = vld [vmem:[%s3 + $0x98] sm:$0xff]
  %v1452 = vld [vmem:[%s3 + $0xa0] sm:$0xff]
  %v1453 = vld [vmem:[%s3 + $0xa8] sm:$0xff]
  %v1454 = vld [vmem:[%s3 + $0xb0] sm:$0xff]
  %v1455 = vld [vmem:[%s3 + $0xb8] sm:$0xff]
  %v1456 = vld [vmem:[%s3 + $0xc0] sm:$0xff]
  %v1457 = vld [vmem:[%s3 + $0xc8] sm:$0xff]
  %v1458 = vld [vmem:[%s3 + $0xd0] sm:$0xff]
  %v1459 = vld [vmem:[%s3 + $0xd8] sm:$0xff]
  %v1460 = vld [vmem:[%s3 + $0xe0] sm:$0xff]
  %v1461 = vld [vmem:[%s3 + $0xe8] sm:$0xff]
  %v1462 = vld [vmem:[%s3 + $0xf0] sm:$0xff]
  %v1463 = vld [vmem:[%s3 + $0xf8] sm:$0xff]
  %v1464 = vld [vmem:[%s3 + $0x100] sm:$0xff]
  %v1465 = vld [vmem:[%s3 + $0x108] sm:$0xff]
  %v1466 = vld [vmem:[%s3 + $0x110] sm:$0xff]
  %v1467 = vld [vmem:[%s3 + $0x118] sm:$0xff]
  %v1468 = vld [vmem:[%s3 + $0x120] sm:$0xff]
  %v1469 = vld [vmem:[%s3 + $0x128] sm:$0xff]
  %v1470 = vld [vmem:[%s3 + $0x130] sm:$0xff]
  %v1471 = vld [vmem:[%s3 + $0x138] sm:$0xff]
  %v1472 = vld [vmem:[%s3 + $0x140] sm:$0xff]
  %v1473 = vld [vmem:[%s3 + $0x148] sm:$0xff]
  %v1474 = vld [vmem:[%s3 + $0x150] sm:$0xff]
  %v1475 = vld [vmem:[%s3 + $0x158] sm:$0xff]
  %v1476 = vld [vmem:[%s3 + $0x160] sm:$0xff]
  %v1477 = vld [vmem:[%s3 + $0x168] sm:$0xff]
  %v1478 = vld [vmem:[%s3 + $0x170] sm:$0xff]
  %v1479 = vld [vmem:[%s3 + $0x178] sm:$0xff]
  %v1480 = vld [vmem:[%s3 + $0x180] sm:$0xff]
  %v1481 = vld [vmem:[%s3 + $0x188] sm:$0xff]
  %v1482 = vld [vmem:[%s3 + $0x190] sm:$0xff]
  %v1483 = vld [vmem:[%s3 + $0x198] sm:$0xff]
  %v1484 = vld [vmem:[%s3 + $0x1a0] sm:$0xff]
  %v1485 = vld [vmem:[%s3 + $0x1a8] sm:$0xff]
  %v1486 = vld [vmem:[%s3 + $0x1b0] sm:$0xff]
  %v1487 = vld [vmem:[%s3 + $0x1b8] sm:$0xff]
  %v1488 = vld [vmem:[%s3 + $0x1c0] sm:$0xff]
  %v1489 = vld [vmem:[%s3 + $0x1c8] sm:$0xff]
  %v1490 = vld [vmem:[%s3 + $0x1d0] sm:$0xff]
  %v1491 = vld [vmem:[%s3 + $0x1d8] sm:$0xff]
  %v1492 = vld [vmem:[%s3 + $0x1e0] sm:$0xff]
  %v1493 = vld [vmem:[%s3 + $0x1e8] sm:$0xff]
  %v1494 = vld [vmem:[%s3 + $0x1f0] sm:$0xff]
  %v1495 = vld [vmem:[%s3 + $0x1f8] sm:$0xff]
  %s1496 = scalar_lea.vmem [#allocation3], 128
  %v1497 = vld [vmem:[%s1496] sm:$0xff]
  %v1498 = vld [vmem:[%s1496 + $0x8] sm:$0xff]
  %1499 = vmatpush.msra.mxu0 %v1462
  %1500 = vmatpush.msra.mxu0 %v1460
  %1501 = vmatpush.msra.mxu0 %v1458
  %1502 = vmatpush.msra.mxu0 %v1456
  %1503 = vmatpush.msra.mxu0 %v1454
  %1504 = vmatpush.msra.mxu0 %v1452
  %1505 = vmatpush.msra.mxu0 %v1450
  %1506 = vmatpush.msra.mxu0 %v1448
  %1507 = vmatpush.msra.mxu0 %v1446
  %1508 = vmatpush.msra.mxu0 %v1444
  %1509 = vmatpush.msra.mxu0 %v1442
  %1510 = vmatpush.msra.mxu0 %v1440
  %1511 = vmatpush.msra.mxu0 %v1438
  %1512 = vmatpush.msra.mxu0 %v1436
  %1513 = vmatpush.msra.mxu0 %v1434
  %1514 = vmatpush.msra.mxu0 %v1432
  %1515 = vmatmul.f32.gmra.mxu0 %v1427
  %v1516 = vpop.f32.mrf.mxu0
  %v1517 = vadd.f32 %v1497, %v1516
  %1518 = vdwg.mxu0
  %1519 = vmatpush.msra.mxu0 %v1494
  %1520 = vmatpush.msra.mxu0 %v1492
  %1521 = vmatpush.msra.mxu0 %v1490
  %1522 = vmatpush.msra.mxu0 %v1488
  %1523 = vmatpush.msra.mxu0 %v1486
  %1524 = vmatpush.msra.mxu0 %v1484
  %1525 = vmatpush.msra.mxu0 %v1482
  %1526 = vmatpush.msra.mxu0 %v1480
  %1527 = vmatpush.msra.mxu0 %v1478
  %1528 = vmatpush.msra.mxu0 %v1476
  %1529 = vmatpush.msra.mxu0 %v1474
  %1530 = vmatpush.msra.mxu0 %v1472
  %1531 = vmatpush.msra.mxu0 %v1470
  %1532 = vmatpush.msra.mxu0 %v1468
  %1533 = vmatpush.msra.mxu0 %v1466
  %1534 = vmatpush.msra.mxu0 %v1464
  %1535 = vmatmul.f32.gmra.mxu0 %v1428
  %v1536 = vpop.f32.mrf.mxu0
  %v1537 = vadd.f32 %v1517, %v1536
  %1538 = vdwg.mxu0
  %1539 = vmatpush.msra.mxu0 %v1463
  %1540 = vmatpush.msra.mxu0 %v1461
  %1541 = vmatpush.msra.mxu0 %v1459
  %1542 = vmatpush.msra.mxu0 %v1457
  %1543 = vmatpush.msra.mxu0 %v1455
  %1544 = vmatpush.msra.mxu0 %v1453
  %1545 = vmatpush.msra.mxu0 %v1451
  %1546 = vmatpush.msra.mxu0 %v1449
  %1547 = vmatpush.msra.mxu0 %v1447
  %1548 = vmatpush.msra.mxu0 %v1445
  %1549 = vmatpush.msra.mxu0 %v1443
  %1550 = vmatpush.msra.mxu0 %v1441
  %1551 = vmatpush.msra.mxu0 %v1439
  %1552 = vmatpush.msra.mxu0 %v1437
  %1553 = vmatpush.msra.mxu0 %v1435
  %1554 = vmatpush.msra.mxu0 %v1433
  %1555 = vmatmul.f32.gmra.mxu0 %v1427
  %v1556 = vpop.f32.mrf.mxu0
  %v1557 = vadd.f32 %v1498, %v1556
  %1558 = vdwg.mxu0
  %1559 = vmatpush.msra.mxu0 %v1495
  %1560 = vmatpush.msra.mxu0 %v1493
  %1561 = vmatpush.msra.mxu0 %v1491
  %1562 = vmatpush.msra.mxu0 %v1489
  %1563 = vmatpush.msra.mxu0 %v1487
  %1564 = vmatpush.msra.mxu0 %v1485
  %1565 = vmatpush.msra.mxu0 %v1483
  %1566 = vmatpush.msra.mxu0 %v1481
  %1567 = vmatpush.msra.mxu0 %v1479
  %1568 = vmatpush.msra.mxu0 %v1477
  %1569 = vmatpush.msra.mxu0 %v1475
  %1570 = vmatpush.msra.mxu0 %v1473
  %1571 = vmatpush.msra.mxu0 %v1471
  %1572 = vmatpush.msra.mxu0 %v1469
  %1573 = vmatpush.msra.mxu0 %v1467
  %1574 = vmatpush.msra.mxu0 %v1465
  %1575 = vmatmul.f32.gmra.mxu0 %v1428
  %v1576 = vpop.f32.mrf.mxu0
  %v1577 = vadd.f32 %v1557, %v1576
  %1578 = vdwg.mxu0
  %v1579 = vtanh.pop %v1537
  %v1580 = vtanh.pop %v1577
  %s1581 = scalar_lea.vmem [#allocation4], 128
  %1582 = vst [vmem:[%s1581] sm:$0xff] %v1579
  %1583 = vst [vmem:[%s1581 + $0x8] sm:$0xff] %v1580
  %v1584 = vld [vmem:[%s3] sm:$0xff]
  %v1585 = vld [vmem:[%s3 + $0x8] sm:$0xff]
  %v1586 = vld [vmem:[%s3 + $0x10] sm:$0xff]
  %v1587 = vld [vmem:[%s3 + $0x18] sm:$0xff]
  %v1588 = vld [vmem:[%s3 + $0x20] sm:$0xff]
  %v1589 = vld [vmem:[%s3 + $0x28] sm:$0xff]
  %v1590 = vld [vmem:[%s3 + $0x30] sm:$0xff]
  %v1591 = vld [vmem:[%s3 + $0x38] sm:$0xff]
  %v1592 = vld [vmem:[%s3 + $0x40] sm:$0xff]
  %v1593 = vld [vmem:[%s3 + $0x48] sm:$0xff]
  %v1594 = vld [vmem:[%s3 + $0x50] sm:$0xff]
  %v1595 = vld [vmem:[%s3 + $0x58] sm:$0xff]
  %v1596 = vld [vmem:[%s3 + $0x60] sm:$0xff]
  %v1597 = vld [vmem:[%s3 + $0x68] sm:$0xff]
  %v1598 = vld [vmem:[%s3 + $0x70] sm:$0xff]
  %v1599 = vld [vmem:[%s3 + $0x78] sm:$0xff]
  %v1600 = vld [vmem:[%s3 + $0x80] sm:$0xff]
  %v1601 = vld [vmem:[%s3 + $0x88] sm:$0xff]
  %v1602 = vld [vmem:[%s3 + $0x90] sm:$0xff]
  %v1603 = vld [vmem:[%s3 + $0x98] sm:$0xff]
  %v1604 = vld [vmem:[%s3 + $0xa0] sm:$0xff]
  %v1605 = vld [vmem:[%s3 + $0xa8] sm:$0xff]
  %v1606 = vld [vmem:[%s3 + $0xb0] sm:$0xff]
  %v1607 = vld [vmem:[%s3 + $0xb8] sm:$0xff]
  %v1608 = vld [vmem:[%s3 + $0xc0] sm:$0xff]
  %v1609 = vld [vmem:[%s3 + $0xc8] sm:$0xff]
  %v1610 = vld [vmem:[%s3 + $0xd0] sm:$0xff]
  %v1611 = vld [vmem:[%s3 + $0xd8] sm:$0xff]
  %v1612 = vld [vmem:[%s3 + $0xe0] sm:$0xff]
  %v1613 = vld [vmem:[%s3 + $0xe8] sm:$0xff]
  %v1614 = vld [vmem:[%s3 + $0xf0] sm:$0xff]
  %v1615 = vld [vmem:[%s3 + $0xf8] sm:$0xff]
  %v1616 = vld [vmem:[%s3 + $0x100] sm:$0xff]
  %v1617 = vld [vmem:[%s3 + $0x108] sm:$0xff]
  %v1618 = vld [vmem:[%s3 + $0x110] sm:$0xff]
  %v1619 = vld [vmem:[%s3 + $0x118] sm:$0xff]
  %v1620 = vld [vmem:[%s3 + $0x120] sm:$0xff]
  %v1621 = vld [vmem:[%s3 + $0x128] sm:$0xff]
  %v1622 = vld [vmem:[%s3 + $0x130] sm:$0xff]
  %v1623 = vld [vmem:[%s3 + $0x138] sm:$0xff]
  %v1624 = vld [vmem:[%s3 + $0x140] sm:$0xff]
  %v1625 = vld [vmem:[%s3 + $0x148] sm:$0xff]
  %v1626 = vld [vmem:[%s3 + $0x150] sm:$0xff]
  %v1627 = vld [vmem:[%s3 + $0x158] sm:$0xff]
  %v1628 = vld [vmem:[%s3 + $0x160] sm:$0xff]
  %v1629 = vld [vmem:[%s3 + $0x168] sm:$0xff]
  %v1630 = vld [vmem:[%s3 + $0x170] sm:$0xff]
  %v1631 = vld [vmem:[%s3 + $0x178] sm:$0xff]
  %v1632 = vld [vmem:[%s3 + $0x180] sm:$0xff]
  %v1633 = vld [vmem:[%s3 + $0x188] sm:$0xff]
  %v1634 = vld [vmem:[%s3 + $0x190] sm:$0xff]
  %v1635 = vld [vmem:[%s3 + $0x198] sm:$0xff]
  %v1636 = vld [vmem:[%s3 + $0x1a0] sm:$0xff]
  %v1637 = vld [vmem:[%s3 + $0x1a8] sm:$0xff]
  %v1638 = vld [vmem:[%s3 + $0x1b0] sm:$0xff]
  %v1639 = vld [vmem:[%s3 + $0x1b8] sm:$0xff]
  %v1640 = vld [vmem:[%s3 + $0x1c0] sm:$0xff]
  %v1641 = vld [vmem:[%s3 + $0x1c8] sm:$0xff]
  %v1642 = vld [vmem:[%s3 + $0x1d0] sm:$0xff]
  %v1643 = vld [vmem:[%s3 + $0x1d8] sm:$0xff]
  %v1644 = vld [vmem:[%s3 + $0x1e0] sm:$0xff]
  %v1645 = vld [vmem:[%s3 + $0x1e8] sm:$0xff]
  %v1646 = vld [vmem:[%s3 + $0x1f0] sm:$0xff]
  %v1647 = vld [vmem:[%s3 + $0x1f8] sm:$0xff]
  %s1648 = scalar_lea.vmem [#allocation3], 144
  %v1649 = vld [vmem:[%s1648] sm:$0xff]
  %v1650 = vld [vmem:[%s1648 + $0x8] sm:$0xff]
  %1651 = vmatpush.msra.mxu0 %v1614
  %1652 = vmatpush.msra.mxu0 %v1612
  %1653 = vmatpush.msra.mxu0 %v1610
  %1654 = vmatpush.msra.mxu0 %v1608
  %1655 = vmatpush.msra.mxu0 %v1606
  %1656 = vmatpush.msra.mxu0 %v1604
  %1657 = vmatpush.msra.mxu0 %v1602
  %1658 = vmatpush.msra.mxu0 %v1600
  %1659 = vmatpush.msra.mxu0 %v1598
  %1660 = vmatpush.msra.mxu0 %v1596
  %1661 = vmatpush.msra.mxu0 %v1594
  %1662 = vmatpush.msra.mxu0 %v1592
  %1663 = vmatpush.msra.mxu0 %v1590
  %1664 = vmatpush.msra.mxu0 %v1588
  %1665 = vmatpush.msra.mxu0 %v1586
  %1666 = vmatpush.msra.mxu0 %v1584
  %1667 = vmatmul.f32.gmra.mxu0 %v1579
  %v1668 = vpop.f32.mrf.mxu0
  %v1669 = vadd.f32 %v1649, %v1668
  %1670 = vdwg.mxu0
  %1671 = vmatpush.msra.mxu0 %v1646
  %1672 = vmatpush.msra.mxu0 %v1644
  %1673 = vmatpush.msra.mxu0 %v1642
  %1674 = vmatpush.msra.mxu0 %v1640
  %1675 = vmatpush.msra.mxu0 %v1638
  %1676 = vmatpush.msra.mxu0 %v1636
  %1677 = vmatpush.msra.mxu0 %v1634
  %1678 = vmatpush.msra.mxu0 %v1632
  %1679 = vmatpush.msra.mxu0 %v1630
  %1680 = vmatpush.msra.mxu0 %v1628
  %1681 = vmatpush.msra.mxu0 %v1626
  %1682 = vmatpush.msra.mxu0 %v1624
  %1683 = vmatpush.msra.mxu0 %v1622
  %1684 = vmatpush.msra.mxu0 %v1620
  %1685 = vmatpush.msra.mxu0 %v1618
  %1686 = vmatpush.msra.mxu0 %v1616
  %1687 = vmatmul.f32.gmra.mxu0 %v1580
  %v1688 = vpop.f32.mrf.mxu0
  %v1689 = vadd.f32 %v1669, %v1688
  %1690 = vdwg.mxu0
  %1691 = vmatpush.msra.mxu0 %v1615
  %1692 = vmatpush.msra.mxu0 %v1613
  %1693 = vmatpush.msra.mxu0 %v1611
  %1694 = vmatpush.msra.mxu0 %v1609
  %1695 = vmatpush.msra.mxu0 %v1607
  %1696 = vmatpush.msra.mxu0 %v1605
  %1697 = vmatpush.msra.mxu0 %v1603
  %1698 = vmatpush.msra.mxu0 %v1601
  %1699 = vmatpush.msra.mxu0 %v1599
  %1700 = vmatpush.msra.mxu0 %v1597
  %1701 = vmatpush.msra.mxu0 %v1595
  %1702 = vmatpush.msra.mxu0 %v1593
  %1703 = vmatpush.msra.mxu0 %v1591
  %1704 = vmatpush.msra.mxu0 %v1589
  %1705 = vmatpush.msra.mxu0 %v1587
  %1706 = vmatpush.msra.mxu0 %v1585
  %1707 = vmatmul.f32.gmra.mxu0 %v1579
  %v1708 = vpop.f32.mrf.mxu0
  %v1709 = vadd.f32 %v1650, %v1708
  %1710 = vdwg.mxu0
  %1711 = vmatpush.msra.mxu0 %v1647
  %1712 = vmatpush.msra.mxu0 %v1645
  %1713 = vmatpush.msra.mxu0 %v1643
  %1714 = vmatpush.msra.mxu0 %v1641
  %1715 = vmatpush.msra.mxu0 %v1639
  %1716 = vmatpush.msra.mxu0 %v1637
  %1717 = vmatpush.msra.mxu0 %v1635
  %1718 = vmatpush.msra.mxu0 %v1633
  %1719 = vmatpush.msra.mxu0 %v1631
  %1720 = vmatpush.msra.mxu0 %v1629
  %1721 = vmatpush.msra.mxu0 %v1627
  %1722 = vmatpush.msra.mxu0 %v1625
  %1723 = vmatpush.msra.mxu0 %v1623
  %1724 = vmatpush.msra.mxu0 %v1621
  %1725 = vmatpush.msra.mxu0 %v1619
  %1726 = vmatpush.msra.mxu0 %v1617
  %1727 = vmatmul.f32.gmra.mxu0 %v1580
  %v1728 = vpop.f32.mrf.mxu0
  %v1729 = vadd.f32 %v1709, %v1728
  %1730 = vdwg.mxu0
  %v1731 = vtanh.pop %v1689
  %v1732 = vtanh.pop %v1729
  %s1733 = scalar_lea.vmem [#allocation4], 144
  %1734 = vst [vmem:[%s1733] sm:$0xff] %v1731
  %1735 = vst [vmem:[%s1733 + $0x8] sm:$0xff] %v1732
  %v1736 = vld [vmem:[%s3] sm:$0xff]
  %v1737 = vld [vmem:[%s3 + $0x8] sm:$0xff]
  %v1738 = vld [vmem:[%s3 + $0x10] sm:$0xff]
  %v1739 = vld [vmem:[%s3 + $0x18] sm:$0xff]
  %v1740 = vld [vmem:[%s3 + $0x20] sm:$0xff]
  %v1741 = vld [vmem:[%s3 + $0x28] sm:$0xff]
  %v1742 = vld [vmem:[%s3 + $0x30] sm:$0xff]
  %v1743 = vld [vmem:[%s3 + $0x38] sm:$0xff]
  %v1744 = vld [vmem:[%s3 + $0x40] sm:$0xff]
  %v1745 = vld [vmem:[%s3 + $0x48] sm:$0xff]
  %v1746 = vld [vmem:[%s3 + $0x50] sm:$0xff]
  %v1747 = vld [vmem:[%s3 + $0x58] sm:$0xff]
  %v1748 = vld [vmem:[%s3 + $0x60] sm:$0xff]
  %v1749 = vld [vmem:[%s3 + $0x68] sm:$0xff]
  %v1750 = vld [vmem:[%s3 + $0x70] sm:$0xff]
  %v1751 = vld [vmem:[%s3 + $0x78] sm:$0xff]
  %v1752 = vld [vmem:[%s3 + $0x80] sm:$0xff]
  %v1753 = vld [vmem:[%s3 + $0x88] sm:$0xff]
  %v1754 = vld [vmem:[%s3 + $0x90] sm:$0xff]
  %v1755 = vld [vmem:[%s3 + $0x98] sm:$0xff]
  %v1756 = vld [vmem:[%s3 + $0xa0] sm:$0xff]
  %v1757 = vld [vmem:[%s3 + $0xa8] sm:$0xff]
  %v1758 = vld [vmem:[%s3 + $0xb0] sm:$0xff]
  %v1759 = vld [vmem:[%s3 + $0xb8] sm:$0xff]
  %v1760 = vld [vmem:[%s3 + $0xc0] sm:$0xff]
  %v1761 = vld [vmem:[%s3 + $0xc8] sm:$0xff]
  %v1762 = vld [vmem:[%s3 + $0xd0] sm:$0xff]
  %v1763 = vld [vmem:[%s3 + $0xd8] sm:$0xff]
  %v1764 = vld [vmem:[%s3 + $0xe0] sm:$0xff]
  %v1765 = vld [vmem:[%s3 + $0xe8] sm:$0xff]
  %v1766 = vld [vmem:[%s3 + $0xf0] sm:$0xff]
  %v1767 = vld [vmem:[%s3 + $0xf8] sm:$0xff]
  %v1768 = vld [vmem:[%s3 + $0x100] sm:$0xff]
  %v1769 = vld [vmem:[%s3 + $0x108] sm:$0xff]
  %v1770 = vld [vmem:[%s3 + $0x110] sm:$0xff]
  %v1771 = vld [vmem:[%s3 + $0x118] sm:$0xff]
  %v1772 = vld [vmem:[%s3 + $0x120] sm:$0xff]
  %v1773 = vld [vmem:[%s3 + $0x128] sm:$0xff]
  %v1774 = vld [vmem:[%s3 + $0x130] sm:$0xff]
  %v1775 = vld [vmem:[%s3 + $0x138] sm:$0xff]
  %v1776 = vld [vmem:[%s3 + $0x140] sm:$0xff]
  %v1777 = vld [vmem:[%s3 + $0x148] sm:$0xff]
  %v1778 = vld [vmem:[%s3 + $0x150] sm:$0xff]
  %v1779 = vld [vmem:[%s3 + $0x158] sm:$0xff]
  %v1780 = vld [vmem:[%s3 + $0x160] sm:$0xff]
  %v1781 = vld [vmem:[%s3 + $0x168] sm:$0xff]
  %v1782 = vld [vmem:[%s3 + $0x170] sm:$0xff]
  %v1783 = vld [vmem:[%s3 + $0x178] sm:$0xff]
  %v1784 = vld [vmem:[%s3 + $0x180] sm:$0xff]
  %v1785 = vld [vmem:[%s3 + $0x188] sm:$0xff]
  %v1786 = vld [vmem:[%s3 + $0x190] sm:$0xff]
  %v1787 = vld [vmem:[%s3 + $0x198] sm:$0xff]
  %v1788 = vld [vmem:[%s3 + $0x1a0] sm:$0xff]
  %v1789 = vld [vmem:[%s3 + $0x1a8] sm:$0xff]
  %v1790 = vld [vmem:[%s3 + $0x1b0] sm:$0xff]
  %v1791 = vld [vmem:[%s3 + $0x1b8] sm:$0xff]
  %v1792 = vld [vmem:[%s3 + $0x1c0] sm:$0xff]
  %v1793 = vld [vmem:[%s3 + $0x1c8] sm:$0xff]
  %v1794 = vld [vmem:[%s3 + $0x1d0] sm:$0xff]
  %v1795 = vld [vmem:[%s3 + $0x1d8] sm:$0xff]
  %v1796 = vld [vmem:[%s3 + $0x1e0] sm:$0xff]
  %v1797 = vld [vmem:[%s3 + $0x1e8] sm:$0xff]
  %v1798 = vld [vmem:[%s3 + $0x1f0] sm:$0xff]
  %v1799 = vld [vmem:[%s3 + $0x1f8] sm:$0xff]
  %s1800 = scalar_lea.vmem [#allocation3], 160
  %v1801 = vld [vmem:[%s1800] sm:$0xff]
  %v1802 = vld [vmem:[%s1800 + $0x8] sm:$0xff]
  %1803 = vmatpush.msra.mxu0 %v1766
  %1804 = vmatpush.msra.mxu0 %v1764
  %1805 = vmatpush.msra.mxu0 %v1762
  %1806 = vmatpush.msra.mxu0 %v1760
  %1807 = vmatpush.msra.mxu0 %v1758
  %1808 = vmatpush.msra.mxu0 %v1756
  %1809 = vmatpush.msra.mxu0 %v1754
  %1810 = vmatpush.msra.mxu0 %v1752
  %1811 = vmatpush.msra.mxu0 %v1750
  %1812 = vmatpush.msra.mxu0 %v1748
  %1813 = vmatpush.msra.mxu0 %v1746
  %1814 = vmatpush.msra.mxu0 %v1744
  %1815 = vmatpush.msra.mxu0 %v1742
  %1816 = vmatpush.msra.mxu0 %v1740
  %1817 = vmatpush.msra.mxu0 %v1738
  %1818 = vmatpush.msra.mxu0 %v1736
  %1819 = vmatmul.f32.gmra.mxu0 %v1731
  %v1820 = vpop.f32.mrf.mxu0
  %v1821 = vadd.f32 %v1801, %v1820
  %1822 = vdwg.mxu0
  %1823 = vmatpush.msra.mxu0 %v1798
  %1824 = vmatpush.msra.mxu0 %v1796
  %1825 = vmatpush.msra.mxu0 %v1794
  %1826 = vmatpush.msra.mxu0 %v1792
  %1827 = vmatpush.msra.mxu0 %v1790
  %1828 = vmatpush.msra.mxu0 %v1788
  %1829 = vmatpush.msra.mxu0 %v1786
  %1830 = vmatpush.msra.mxu0 %v1784
  %1831 = vmatpush.msra.mxu0 %v1782
  %1832 = vmatpush.msra.mxu0 %v1780
  %1833 = vmatpush.msra.mxu0 %v1778
  %1834 = vmatpush.msra.mxu0 %v1776
  %1835 = vmatpush.msra.mxu0 %v1774
  %1836 = vmatpush.msra.mxu0 %v1772
  %1837 = vmatpush.msra.mxu0 %v1770
  %1838 = vmatpush.msra.mxu0 %v1768
  %1839 = vmatmul.f32.gmra.mxu0 %v1732
  %v1840 = vpop.f32.mrf.mxu0
  %v1841 = vadd.f32 %v1821, %v1840
  %1842 = vdwg.mxu0
  %1843 = vmatpush.msra.mxu0 %v1767
  %1844 = vmatpush.msra.mxu0 %v1765
  %1845 = vmatpush.msra.mxu0 %v1763
  %1846 = vmatpush.msra.mxu0 %v1761
  %1847 = vmatpush.msra.mxu0 %v1759
  %1848 = vmatpush.msra.mxu0 %v1757
  %1849 = vmatpush.msra.mxu0 %v1755
  %1850 = vmatpush.msra.mxu0 %v1753
  %1851 = vmatpush.msra.mxu0 %v1751
  %1852 = vmatpush.msra.mxu0 %v1749
  %1853 = vmatpush.msra.mxu0 %v1747
  %1854 = vmatpush.msra.mxu0 %v1745
  %1855 = vmatpush.msra.mxu0 %v1743
  %1856 = vmatpush.msra.mxu0 %v1741
  %1857 = vmatpush.msra.mxu0 %v1739
  %1858 = vmatpush.msra.mxu0 %v1737
  %1859 = vmatmul.f32.gmra.mxu0 %v1731
  %v1860 = vpop.f32.mrf.mxu0
  %v1861 = vadd.f32 %v1802, %v1860
  %1862 = vdwg.mxu0
  %1863 = vmatpush.msra.mxu0 %v1799
  %1864 = vmatpush.msra.mxu0 %v1797
  %1865 = vmatpush.msra.mxu0 %v1795
  %1866 = vmatpush.msra.mxu0 %v1793
  %1867 = vmatpush.msra.mxu0 %v1791
  %1868 = vmatpush.msra.mxu0 %v1789
  %1869 = vmatpush.msra.mxu0 %v1787
  %1870 = vmatpush.msra.mxu0 %v1785
  %1871 = vmatpush.msra.mxu0 %v1783
  %1872 = vmatpush.msra.mxu0 %v1781
  %1873 = vmatpush.msra.mxu0 %v1779
  %1874 = vmatpush.msra.mxu0 %v1777
  %1875 = vmatpush.msra.mxu0 %v1775
  %1876 = vmatpush.msra.mxu0 %v1773
  %1877 = vmatpush.msra.mxu0 %v1771
  %1878 = vmatpush.msra.mxu0 %v1769
  %1879 = vmatmul.f32.gmra.mxu0 %v1732
  %v1880 = vpop.f32.mrf.mxu0
  %v1881 = vadd.f32 %v1861, %v1880
  %1882 = vdwg.mxu0
  %v1883 = vtanh.pop %v1841
  %v1884 = vtanh.pop %v1881
  %s1885 = scalar_lea.vmem [#allocation4], 160
  %1886 = vst [vmem:[%s1885] sm:$0xff] %v1883
  %1887 = vst [vmem:[%s1885 + $0x8] sm:$0xff] %v1884
  %v1888 = vld [vmem:[%s3] sm:$0xff]
  %v1889 = vld [vmem:[%s3 + $0x8] sm:$0xff]
  %v1890 = vld [vmem:[%s3 + $0x10] sm:$0xff]
  %v1891 = vld [vmem:[%s3 + $0x18] sm:$0xff]
  %v1892 = vld [vmem:[%s3 + $0x20] sm:$0xff]
  %v1893 = vld [vmem:[%s3 + $0x28] sm:$0xff]
  %v1894 = vld [vmem:[%s3 + $0x30] sm:$0xff]
  %v1895 = vld [vmem:[%s3 + $0x38] sm:$0xff]
  %v1896 = vld [vmem:[%s3 + $0x40] sm:$0xff]
  %v1897 = vld [vmem:[%s3 + $0x48] sm:$0xff]
  %v1898 = vld [vmem:[%s3 + $0x50] sm:$0xff]
  %v1899 = vld [vmem:[%s3 + $0x58] sm:$0xff]
  %v1900 = vld [vmem:[%s3 + $0x60] sm:$0xff]
  %v1901 = vld [vmem:[%s3 + $0x68] sm:$0xff]
  %v1902 = vld [vmem:[%s3 + $0x70] sm:$0xff]
  %v1903 = vld [vmem:[%s3 + $0x78] sm:$0xff]
  %v1904 = vld [vmem:[%s3 + $0x80] sm:$0xff]
  %v1905 = vld [vmem:[%s3 + $0x88] sm:$0xff]
  %v1906 = vld [vmem:[%s3 + $0x90] sm:$0xff]
  %v1907 = vld [vmem:[%s3 + $0x98] sm:$0xff]
  %v1908 = vld [vmem:[%s3 + $0xa0] sm:$0xff]
  %v1909 = vld [vmem:[%s3 + $0xa8] sm:$0xff]
  %v1910 = vld [vmem:[%s3 + $0xb0] sm:$0xff]
  %v1911 = vld [vmem:[%s3 + $0xb8] sm:$0xff]
  %v1912 = vld [vmem:[%s3 + $0xc0] sm:$0xff]
  %v1913 = vld [vmem:[%s3 + $0xc8] sm:$0xff]
  %v1914 = vld [vmem:[%s3 + $0xd0] sm:$0xff]
  %v1915 = vld [vmem:[%s3 + $0xd8] sm:$0xff]
  %v1916 = vld [vmem:[%s3 + $0xe0] sm:$0xff]
  %v1917 = vld [vmem:[%s3 + $0xe8] sm:$0xff]
  %v1918 = vld [vmem:[%s3 + $0xf0] sm:$0xff]
  %v1919 = vld [vmem:[%s3 + $0xf8] sm:$0xff]
  %v1920 = vld [vmem:[%s3 + $0x100] sm:$0xff]
  %v1921 = vld [vmem:[%s3 + $0x108] sm:$0xff]
  %v1922 = vld [vmem:[%s3 + $0x110] sm:$0xff]
  %v1923 = vld [vmem:[%s3 + $0x118] sm:$0xff]
  %v1924 = vld [vmem:[%s3 + $0x120] sm:$0xff]
  %v1925 = vld [vmem:[%s3 + $0x128] sm:$0xff]
  %v1926 = vld [vmem:[%s3 + $0x130] sm:$0xff]
  %v1927 = vld [vmem:[%s3 + $0x138] sm:$0xff]
  %v1928 = vld [vmem:[%s3 + $0x140] sm:$0xff]
  %v1929 = vld [vmem:[%s3 + $0x148] sm:$0xff]
  %v1930 = vld [vmem:[%s3 + $0x150] sm:$0xff]
  %v1931 = vld [vmem:[%s3 + $0x158] sm:$0xff]
  %v1932 = vld [vmem:[%s3 + $0x160] sm:$0xff]
  %v1933 = vld [vmem:[%s3 + $0x168] sm:$0xff]
  %v1934 = vld [vmem:[%s3 + $0x170] sm:$0xff]
  %v1935 = vld [vmem:[%s3 + $0x178] sm:$0xff]
  %v1936 = vld [vmem:[%s3 + $0x180] sm:$0xff]
  %v1937 = vld [vmem:[%s3 + $0x188] sm:$0xff]
  %v1938 = vld [vmem:[%s3 + $0x190] sm:$0xff]
  %v1939 = vld [vmem:[%s3 + $0x198] sm:$0xff]
  %v1940 = vld [vmem:[%s3 + $0x1a0] sm:$0xff]
  %v1941 = vld [vmem:[%s3 + $0x1a8] sm:$0xff]
  %v1942 = vld [vmem:[%s3 + $0x1b0] sm:$0xff]
  %v1943 = vld [vmem:[%s3 + $0x1b8] sm:$0xff]
  %v1944 = vld [vmem:[%s3 + $0x1c0] sm:$0xff]
  %v1945 = vld [vmem:[%s3 + $0x1c8] sm:$0xff]
  %v1946 = vld [vmem:[%s3 + $0x1d0] sm:$0xff]
  %v1947 = vld [vmem:[%s3 + $0x1d8] sm:$0xff]
  %v1948 = vld [vmem:[%s3 + $0x1e0] sm:$0xff]
  %v1949 = vld [vmem:[%s3 + $0x1e8] sm:$0xff]
  %v1950 = vld [vmem:[%s3 + $0x1f0] sm:$0xff]
  %v1951 = vld [vmem:[%s3 + $0x1f8] sm:$0xff]
  %s1952 = scalar_lea.vmem [#allocation3], 176
  %v1953 = vld [vmem:[%s1952] sm:$0xff]
  %v1954 = vld [vmem:[%s1952 + $0x8] sm:$0xff]
  %1955 = vmatpush.msra.mxu0 %v1918
  %1956 = vmatpush.msra.mxu0 %v1916
  %1957 = vmatpush.msra.mxu0 %v1914
  %1958 = vmatpush.msra.mxu0 %v1912
  %1959 = vmatpush.msra.mxu0 %v1910
  %1960 = vmatpush.msra.mxu0 %v1908
  %1961 = vmatpush.msra.mxu0 %v1906
  %1962 = vmatpush.msra.mxu0 %v1904
  %1963 = vmatpush.msra.mxu0 %v1902
  %1964 = vmatpush.msra.mxu0 %v1900
  %1965 = vmatpush.msra.mxu0 %v1898
  %1966 = vmatpush.msra.mxu0 %v1896
  %1967 = vmatpush.msra.mxu0 %v1894
  %1968 = vmatpush.msra.mxu0 %v1892
  %1969 = vmatpush.msra.mxu0 %v1890
  %1970 = vmatpush.msra.mxu0 %v1888
  %1971 = vmatmul.f32.gmra.mxu0 %v1883
  %v1972 = vpop.f32.mrf.mxu0
  %v1973 = vadd.f32 %v1953, %v1972
  %1974 = vdwg.mxu0
  %1975 = vmatpush.msra.mxu0 %v1950
  %1976 = vmatpush.msra.mxu0 %v1948
  %1977 = vmatpush.msra.mxu0 %v1946
  %1978 = vmatpush.msra.mxu0 %v1944
  %1979 = vmatpush.msra.mxu0 %v1942
  %1980 = vmatpush.msra.mxu0 %v1940
  %1981 = vmatpush.msra.mxu0 %v1938
  %1982 = vmatpush.msra.mxu0 %v1936
  %1983 = vmatpush.msra.mxu0 %v1934
  %1984 = vmatpush.msra.mxu0 %v1932
  %1985 = vmatpush.msra.mxu0 %v1930
  %1986 = vmatpush.msra.mxu0 %v1928
  %1987 = vmatpush.msra.mxu0 %v1926
  %1988 = vmatpush.msra.mxu0 %v1924
  %1989 = vmatpush.msra.mxu0 %v1922
  %1990 = vmatpush.msra.mxu0 %v1920
  %1991 = vmatmul.f32.gmra.mxu0 %v1884
  %v1992 = vpop.f32.mrf.mxu0
  %v1993 = vadd.f32 %v1973, %v1992
  %1994 = vdwg.mxu0
  %1995 = vmatpush.msra.mxu0 %v1919
  %1996 = vmatpush.msra.mxu0 %v1917
  %1997 = vmatpush.msra.mxu0 %v1915
  %1998 = vmatpush.msra.mxu0 %v1913
  %1999 = vmatpush.msra.mxu0 %v1911
  %2000 = vmatpush.msra.mxu0 %v1909
  %2001 = vmatpush.msra.mxu0 %v1907
  %2002 = vmatpush.msra.mxu0 %v1905
  %2003 = vmatpush.msra.mxu0 %v1903
  %2004 = vmatpush.msra.mxu0 %v1901
  %2005 = vmatpush.msra.mxu0 %v1899
  %2006 = vmatpush.msra.mxu0 %v1897
  %2007 = vmatpush.msra.mxu0 %v1895
  %2008 = vmatpush.msra.mxu0 %v1893
  %2009 = vmatpush.msra.mxu0 %v1891
  %2010 = vmatpush.msra.mxu0 %v1889
  %2011 = vmatmul.f32.gmra.mxu0 %v1883
  %v2012 = vpop.f32.mrf.mxu0
  %v2013 = vadd.f32 %v1954, %v2012
  %2014 = vdwg.mxu0
  %2015 = vmatpush.msra.mxu0 %v1951
  %2016 = vmatpush.msra.mxu0 %v1949
  %2017 = vmatpush.msra.mxu0 %v1947
  %2018 = vmatpush.msra.mxu0 %v1945
  %2019 = vmatpush.msra.mxu0 %v1943
  %2020 = vmatpush.msra.mxu0 %v1941
  %2021 = vmatpush.msra.mxu0 %v1939
  %2022 = vmatpush.msra.mxu0 %v1937
  %2023 = vmatpush.msra.mxu0 %v1935
  %2024 = vmatpush.msra.mxu0 %v1933
  %2025 = vmatpush.msra.mxu0 %v1931
  %2026 = vmatpush.msra.mxu0 %v1929
  %2027 = vmatpush.msra.mxu0 %v1927
  %2028 = vmatpush.msra.mxu0 %v1925
  %2029 = vmatpush.msra.mxu0 %v1923
  %2030 = vmatpush.msra.mxu0 %v1921
  %2031 = vmatmul.f32.gmra.mxu0 %v1884
  %v2032 = vpop.f32.mrf.mxu0
  %v2033 = vadd.f32 %v2013, %v2032
  %2034 = vdwg.mxu0
  %v2035 = vtanh.pop %v1993
  %v2036 = vtanh.pop %v2033
  %s2037 = scalar_lea.vmem [#allocation4], 176
  %2038 = vst [vmem:[%s2037] sm:$0xff] %v2035
  %2039 = vst [vmem:[%s2037 + $0x8] sm:$0xff] %v2036
  %2040 = vst [vmem:[#allocation2] sm:$0xff] %v2035
  %2041 = vst [vmem:[#allocation2 + $0x8] sm:$0xff] %v2036
  %v2042 = vld [vmem:[#allocation4] sm:$0xff]
  %v2043 = vld [vmem:[#allocation4 + $0x8] sm:$0xff]
  %v2044 = vld [vmem:[#allocation4 + $0x10] sm:$0xff]
  %v2045 = vld [vmem:[#allocation4 + $0x18] sm:$0xff]
  %v2046 = vld [vmem:[#allocation4 + $0x20] sm:$0xff]
  %v2047 = vld [vmem:[#allocation4 + $0x28] sm:$0xff]
  %v2048 = vld [vmem:[#allocation4 + $0x30] sm:$0xff]
  %v2049 = vld [vmem:[#allocation4 + $0x38] sm:$0xff]
  %v2050 = vld [vmem:[#allocation4 + $0x40] sm:$0xff]
  %v2051 = vld [vmem:[#allocation4 + $0x48] sm:$0xff]
  %v2052 = vld [vmem:[#allocation4 + $0x50] sm:$0xff]
  %v2053 = vld [vmem:[#allocation4 + $0x58] sm:$0xff]
  %v2054 = vld [vmem:[#allocation4 + $0x60] sm:$0xff]
  %v2055 = vld [vmem:[#allocation4 + $0x68] sm:$0xff]
  %v2056 = vld [vmem:[#allocation4 + $0x70] sm:$0xff]
  %v2057 = vld [vmem:[#allocation4 + $0x78] sm:$0xff]
  %v2058 = vld [vmem:[#allocation4 + $0x80] sm:$0xff]
  %v2059 = vld [vmem:[#allocation4 + $0x88] sm:$0xff]
  %v2060 = vld [vmem:[#allocation4 + $0x90] sm:$0xff]
  %v2061 = vld [vmem:[#allocation4 + $0x98] sm:$0xff]
  %v2062 = vld [vmem:[#allocation4 + $0xa0] sm:$0xff]
  %v2063 = vld [vmem:[#allocation4 + $0xa8] sm:$0xff]
  %v2064 = vld [vmem:[#allocation4 + $0xb0] sm:$0xff]
  %v2065 = vld [vmem:[#allocation4 + $0xb8] sm:$0xff]
  %v2066 = vld [vmem:[%s4] sm:$0xff]
  %v2067 = vld [vmem:[%s4 + $0x8] sm:$0xff]
  %v2068 = vld [vmem:[%s4 + $0x10] sm:$0xff]
  %v2069 = vld [vmem:[%s4 + $0x18] sm:$0xff]
  %v2070 = vld [vmem:[%s4 + $0x20] sm:$0xff]
  %v2071 = vld [vmem:[%s4 + $0x28] sm:$0xff]
  %v2072 = vld [vmem:[%s4 + $0x30] sm:$0xff]
  %v2073 = vld [vmem:[%s4 + $0x38] sm:$0xff]
  %v2074 = vld [vmem:[%s4 + $0x40] sm:$0xff]
  %v2075 = vld [vmem:[%s4 + $0x48] sm:$0xff]
  %v2076 = vld [vmem:[%s4 + $0x50] sm:$0xff]
  %v2077 = vld [vmem:[%s4 + $0x58] sm:$0xff]
  %v2078 = vld [vmem:[%s4 + $0x60] sm:$0xff]
  %v2079 = vld [vmem:[%s4 + $0x68] sm:$0xff]
  %v2080 = vld [vmem:[%s4 + $0x70] sm:$0xff]
  %v2081 = vld [vmem:[%s4 + $0x78] sm:$0xff]
  %v2082 = vld [vmem:[%s4 + $0x80] sm:$0xff]
  %v2083 = vld [vmem:[%s4 + $0x88] sm:$0xff]
  %v2084 = vld [vmem:[%s4 + $0x90] sm:$0xff]
  %v2085 = vld [vmem:[%s4 + $0x98] sm:$0xff]
  %v2086 = vld [vmem:[%s4 + $0xa0] sm:$0xff]
  %v2087 = vld [vmem:[%s4 + $0xa8] sm:$0xff]
  %v2088 = vld [vmem:[%s4 + $0xb0] sm:$0xff]
  %v2089 = vld [vmem:[%s4 + $0xb8] sm:$0xff]
  %v2090 = vld [vmem:[%s4 + $0xc0] sm:$0xff]
  %v2091 = vld [vmem:[%s4 + $0xc8] sm:$0xff]
  %v2092 = vld [vmem:[%s4 + $0xd0] sm:$0xff]
  %v2093 = vld [vmem:[%s4 + $0xd8] sm:$0xff]
  %v2094 = vld [vmem:[%s4 + $0xe0] sm:$0xff]
  %v2095 = vld [vmem:[%s4 + $0xe8] sm:$0xff]
  %v2096 = vld [vmem:[%s4 + $0xf0] sm:$0xff]
  %v2097 = vld [vmem:[%s4 + $0xf8] sm:$0xff]
  %v2098 = vld [vmem:[%s6] sm:$0x1]
  %v2100 = vperm.slane %v2098, 0
  %2102 = vmatpush.msra.mxu0 %v2081
  %2103 = vmatpush.msra.mxu0 %v2080
  %2104 = vmatpush.msra.mxu0 %v2079
  %2105 = vmatpush.msra.mxu0 %v2078
  %2106 = vmatpush.msra.mxu0 %v2077
  %2107 = vmatpush.msra.mxu0 %v2076
  %2108 = vmatpush.msra.mxu0 %v2075
  %2109 = vmatpush.msra.mxu0 %v2074
  %2110 = vmatpush.msra.mxu0 %v2073
  %2111 = vmatpush.msra.mxu0 %v2072
  %2112 = vmatpush.msra.mxu0 %v2071
  %2113 = vmatpush.msra.mxu0 %v2070
  %2114 = vmatpush.msra.mxu0 %v2069
  %2115 = vmatpush.msra.mxu0 %v2068
  %2116 = vmatpush.msra.mxu0 %v2067
  %2117 = vmatpush.msra.mxu0 %v2066
  %2118 = vmatmul.f32.gmra.mxu0 %v2042
  %v2119 = vpop.f32.mrf.mxu0
  %v2120 = vadd.f32 %v2100, %v2119
  %2121 = vmatmul.f32.gmra.mxu0 %v2044
  %v2122 = vpop.f32.mrf.mxu0
  %v2123 = vadd.f32 %v2100, %v2122
  %2124 = vmatmul.f32.gmra.mxu0 %v2046
  %v2125 = vpop.f32.mrf.mxu0
  %v2126 = vadd.f32 %v2100, %v2125
  %2127 = vmatmul.f32.gmra.mxu0 %v2048
  %v2128 = vpop.f32.mrf.mxu0
  %v2129 = vadd.f32 %v2100, %v2128
  %2130 = vmatmul.f32.gmra.mxu0 %v2050
  %v2131 = vpop.f32.mrf.mxu0
  %v2132 = vadd.f32 %v2100, %v2131
  %2133 = vmatmul.f32.gmra.mxu0 %v2052
  %v2134 = vpop.f32.mrf.mxu0
  %v2135 = vadd.f32 %v2100, %v2134
  %2136 = vmatmul.f32.gmra.mxu0 %v2054
  %v2137 = vpop.f32.mrf.mxu0
  %v2138 = vadd.f32 %v2100, %v2137
  %2139 = vmatmul.f32.gmra.mxu0 %v2056
  %v2140 = vpop.f32.mrf.mxu0
  %v2141 = vadd.f32 %v2100, %v2140
  %2142 = vmatmul.f32.gmra.mxu0 %v2058
  %v2143 = vpop.f32.mrf.mxu0
  %v2144 = vadd.f32 %v2100, %v2143
  %2145 = vmatmul.f32.gmra.mxu0 %v2060
  %v2146 = vpop.f32.mrf.mxu0
  %v2147 = vadd.f32 %v2100, %v2146
  %2148 = vmatmul.f32.gmra.mxu0 %v2062
  %v2149 = vpop.f32.mrf.mxu0
  %v2150 = vadd.f32 %v2100, %v2149
  %2151 = vmatmul.f32.gmra.mxu0 %v2064
  %v2152 = vpop.f32.mrf.mxu0
  %v2153 = vadd.f32 %v2100, %v2152
  %2154 = vdwg.mxu0
  %2155 = vmatpush.msra.mxu0 %v2097
  %2156 = vmatpush.msra.mxu0 %v2096
  %2157 = vmatpush.msra.mxu0 %v2095
  %2158 = vmatpush.msra.mxu0 %v2094
  %2159 = vmatpush.msra.mxu0 %v2093
  %2160 = vmatpush.msra.mxu0 %v2092
  %2161 = vmatpush.msra.mxu0 %v2091
  %2162 = vmatpush.msra.mxu0 %v2090
  %2163 = vmatpush.msra.mxu0 %v2089
  %2164 = vmatpush.msra.mxu0 %v2088
  %2165 = vmatpush.msra.mxu0 %v2087
  %2166 = vmatpush.msra.mxu0 %v2086
  %2167 = vmatpush.msra.mxu0 %v2085
  %2168 = vmatpush.msra.mxu0 %v2084
  %2169 = vmatpush.msra.mxu0 %v2083
  %2170 = vmatpush.msra.mxu0 %v2082
  %2171 = vmatmul.f32.gmra.mxu0 %v2043
  %v2172 = vpop.f32.mrf.mxu0
  %v2173 = vadd.f32 %v2120, %v2172
  %2174 = vmatmul.f32.gmra.mxu0 %v2045
  %v2175 = vpop.f32.mrf.mxu0
  %v2176 = vadd.f32 %v2123, %v2175
  %2177 = vmatmul.f32.gmra.mxu0 %v2047
  %v2178 = vpop.f32.mrf.mxu0
  %v2179 = vadd.f32 %v2126, %v2178
  %2180 = vmatmul.f32.gmra.mxu0 %v2049
  %v2181 = vpop.f32.mrf.mxu0
  %v2182 = vadd.f32 %v2129, %v2181
  %2183 = vmatmul.f32.gmra.mxu0 %v2051
  %v2184 = vpop.f32.mrf.mxu0
  %v2185 = vadd.f32 %v2132, %v2184
  %2186 = vmatmul.f32.gmra.mxu0 %v2053
  %v2187 = vpop.f32.mrf.mxu0
  %v2188 = vadd.f32 %v2135, %v2187
  %2189 = vmatmul.f32.gmra.mxu0 %v2055
  %v2190 = vpop.f32.mrf.mxu0
  %v2191 = vadd.f32 %v2138, %v2190
  %2192 = vmatmul.f32.gmra.mxu0 %v2057
  %v2193 = vpop.f32.mrf.mxu0
  %v2194 = vadd.f32 %v2141, %v2193
  %2195 = vmatmul.f32.gmra.mxu0 %v2059
  %v2196 = vpop.f32.mrf.mxu0
  %v2197 = vadd.f32 %v2144, %v2196
  %2198 = vmatmul.f32.gmra.mxu0 %v2061
  %v2199 = vpop.f32.mrf.mxu0
  %v2200 = vadd.f32 %v2147, %v2199
  %2201 = vmatmul.f32.gmra.mxu0 %v2063
  %v2202 = vpop.f32.mrf.mxu0
  %v2203 = vadd.f32 %v2150, %v2202
  %2204 = vmatmul.f32.gmra.mxu0 %v2065
  %v2205 = vpop.f32.mrf.mxu0
  %v2206 = vadd.f32 %v2153, %v2205
  %2207 = vdwg.mxu0
  %2208 = vst [vmem:[%s7] sm:$0xff] %v2173
  %2209 = vst [vmem:[%s7 + $0x8] sm:$0xff] %v2176
  %2210 = vst [vmem:[%s7 + $0x10] sm:$0xff] %v2179
  %2211 = vst [vmem:[%s7 + $0x18] sm:$0xff] %v2182
  %2212 = vst [vmem:[%s7 + $0x20] sm:$0xff] %v2185
  %2213 = vst [vmem:[%s7 + $0x28] sm:$0xff] %v2188
  %2214 = vst [vmem:[%s7 + $0x30] sm:$0xff] %v2191
  %2215 = vst [vmem:[%s7 + $0x38] sm:$0xff] %v2194
  %2216 = vst [vmem:[%s7 + $0x40] sm:$0xff] %v2197
  %2217 = vst [vmem:[%s7 + $0x48] sm:$0xff] %v2200
  %2218 = vst [vmem:[%s7 + $0x50] sm:$0xff] %v2203
  %2219 = vst [vmem:[%s7 + $0x58] sm:$0xff] %v2206
  // Predicated region
  $region34: #{char_rnn_forward.1} parent=0 // pred_check
    %p2220 = pneg %p28
  $region35: #{char_rnn_forward.1} parent=0 // pred_check_branch
    %2222 = sbr.rel (%p2220) target = $region37
  $region36: #{char_rnn_forward.1} parent=0 // pred_region
    %v2223 = vld [vmem:[%s2037] sm:$0xff]
    %v2224 = vld [vmem:[%s2037 + $0x8] sm:$0xff]
    %2225 = vst [vmem:[%s8] sm:$0xff] %v2223
    %2226 = vst [vmem:[%s8 + $0x8] sm:$0xff] %v2224
  $region37: #{char_rnn_forward.1} parent=0 // pred_fallthru
    _
  // Predicated region
  $region38: #{char_rnn_forward.1} parent=0 // pred_check
    _
  $region39: #{char_rnn_forward.1} parent=0 // pred_check_branch
    %2228 = sbr.rel (0) target = $region41
  $region40: #{char_rnn_forward.1} parent=0 // pred_region
    _
  $region41: #{char_rnn_forward.1} parent=0 // pred_fallthru
    _
  // Predicated region
  $region42: #{char_rnn_forward.1} parent=0 // pred_check
    _
  $region43: #{char_rnn_forward.1} parent=0 // pred_check_branch
    %2230 = sbr.rel (0) target = $region45
  $region44: #{char_rnn_forward.1} parent=0 // pred_region
    _
  $region45: #{char_rnn_forward.1} parent=0 // pred_fallthru
    _
  // Predicated region
  $region46: #{char_rnn_forward.1} parent=0 // pred_check
    _
  $region47: #{char_rnn_forward.1} parent=0 // pred_check_branch
    %2232 = sbr.rel (0) target = $region49
  $region48: #{char_rnn_forward.1} parent=0 // pred_region
    _
  $region49: #{char_rnn_forward.1} parent=0 // pred_fallthru
    _
  // Predicated region
  $region50: #{char_rnn_forward.1} parent=0 // pred_check
    _
  $region51: #{char_rnn_forward.1} parent=0 // pred_check_branch
    %2234 = sbr.rel (0) target = $region53
  $region52: #{char_rnn_forward.1} parent=0 // pred_region
    _
  $region53: #{char_rnn_forward.1} parent=0 // pred_fallthru
    _

</llo_original>
